<compile_context>
chip_gen: v5e
topology: v5e:2x2
jax: 0.10.0
libtpu: 0.0.40
codegen_flags: <defaults>
</compile_context>

<pallas_src>
import functools

import jax
import jax.numpy as jnp
from jax.experimental import pallas as pl
from jax.experimental.pallas import tpu as pltpu

NUM_CLASSES = 1500
HIDDEN1 = 512
HIDDEN2 = 256


def _round_up(x, m):
    return (x + m - 1) // m * m


def _mlp_kernel(x_ref, w1_ref, b1_ref, w2_ref, b2_ref, w3_ref, b3_ref, o_ref):
    """Fused (Linear -> ReLU) x2 -> Linear on one (TM, K) row-tile of activations.

    Matmuls: bf16 inputs, f32 accumulation (preferred_element_type).
    Bias add / ReLU in f32 on the VPU; intermediates recast to bf16 for the MXU.
    """
    x = x_ref[...]
    h1 = jnp.dot(x, w1_ref[...], preferred_element_type=jnp.float32) + b1_ref[...]
    h1 = jnp.maximum(h1, 0.0).astype(w2_ref.dtype)
    h2 = jnp.dot(h1, w2_ref[...], preferred_element_type=jnp.float32) + b2_ref[...]
    h2 = jnp.maximum(h2, 0.0).astype(w3_ref.dtype)
    out = jnp.dot(h2, w3_ref[...], preferred_element_type=jnp.float32) + b3_ref[...]
    o_ref[...] = out.astype(o_ref.dtype)


@functools.partial(jax.jit, static_argnames=("block_m",))
def mlp_forward(x, w1, b1, w2, b2, w3, b3, *, block_m=256):
    batch, in_dim = x.shape
    h1_dim, h2_dim = w1.shape[1], w2.shape[1]
    num_classes = w3.shape[1]

    # --- Pad to MXU/lane-friendly sizes (pads are zeros, so the math is exact) ---
    k_p = _round_up(in_dim, 128)        # layer-1 contraction dim (64 -> 128)
    n_p = _round_up(num_classes, 128)   # classifier dim (1500 -> 1536), lane-dense stores
    tm = min(block_m, _round_up(batch, 8))
    m_p = _round_up(batch, tm)

    f32, bf16 = jnp.float32, jnp.bfloat16
    x_p = jnp.pad(x, ((0, m_p - batch), (0, k_p - in_dim))).astype(bf16)
    w1_p = jnp.pad(w1, ((0, k_p - in_dim), (0, 0))).astype(bf16)
    w2_p = w2.astype(bf16)
    w3_p = jnp.pad(w3, ((0, 0), (0, n_p - num_classes))).astype(bf16)
    b1_p = b1.astype(f32)
    b2_p = b2.astype(f32)
    b3_p = jnp.pad(b3, ((0, 0), (0, n_p - num_classes))).astype(f32)

    grid = (m_p // tm,)
    flops = 2 * m_p * (k_p * h1_dim + h1_dim * h2_dim + h2_dim * n_p)
    bytes_accessed = (
        x_p.size * 2 + w1_p.size * 2 + w2_p.size * 2 + w3_p.size * 2
        + b1_p.size * 4 + b2_p.size * 4 + b3_p.size * 4 + m_p * n_p * 4
    )

    out_p = pl.pallas_call(
        _mlp_kernel,
        out_shape=jax.ShapeDtypeStruct((m_p, n_p), f32),
        grid=grid,
        in_specs=[
            # Activations: tiled over the batch (double-buffered by Pallas).
            pl.BlockSpec((tm, k_p), lambda i: (i, 0)),
            # Weights / biases: constant block index -> fetched once, VMEM resident.
            pl.BlockSpec((k_p, h1_dim), lambda i: (0, 0)),
            pl.BlockSpec((1, h1_dim), lambda i: (0, 0)),
            pl.BlockSpec((h1_dim, h2_dim), lambda i: (0, 0)),
            pl.BlockSpec((1, h2_dim), lambda i: (0, 0)),
            pl.BlockSpec((h2_dim, n_p), lambda i: (0, 0)),
            pl.BlockSpec((1, n_p), lambda i: (0, 0)),
        ],
        out_specs=pl.BlockSpec((tm, n_p), lambda i: (i, 0)),
        compiler_params=pltpu.CompilerParams(
            # Batch tiles are independent: lets v7x shard them over both TCs;
            # harmless no-op on v5e/v6e.  No vmem_limit override: footprint is
            # ~1 MiB of weights + a few double-buffered tiles, well under default.
            dimension_semantics=("parallel",),
        ),
        cost_estimate=pl.CostEstimate(
            flops=flops, transcendentals=0, bytes_accessed=bytes_accessed),
    )(x_p, w1_p, b1_p, w2_p, b2_p, w3_p, b3_p)

    return out_p[:batch, :num_classes]


def init_params(key, input_dim, num_classes):
    """Deterministic init mirroring nn.Linear shapes (stored transposed: (in, out))."""
    ks = jax.random.split(key, 6)

    def linear(kw, kb, fan_in, fan_out):
        bound = 1.0 / jnp.sqrt(fan_in)
        w = jax.random.uniform(kw, (fan_in, fan_out), jnp.float32, -bound, bound)
        b = jax.random.uniform(kb, (1, fan_out), jnp.float32, -bound, bound)
        return w, b

    w1, b1 = linear(ks[0], ks[1], input_dim, HIDDEN1)
    w2, b2 = linear(ks[2], ks[3], HIDDEN1, HIDDEN2)
    w3, b3 = linear(ks[4], ks[5], HIDDEN2, num_classes)
    return w1, b1, w2, b2, w3, b3


def _reference(x, params):
    """Plain-JAX reference with the same bf16 rounding as the kernel."""
    w1, b1, w2, b2, w3, b3 = params
    bf16, f32 = jnp.bfloat16, jnp.float32
    r = lambda a: a.astype(bf16).astype(f32)
    h = jnp.maximum(r(x) @ r(w1) + b1, 0.0)
    h = jnp.maximum(r(h) @ r(w2) + b2, 0.0)
    return r(h) @ r(w3) + b3


if __name__ == "__main__":
    key = jax.random.PRNGKey(0)
    k_x, k_p = jax.random.split(key)

    input_dim = 64
    params = init_params(k_p, input_dim, NUM_CLASSES)

    # Small batch (original spec-sized smoke test).
    batch = 8
    x = jax.random.normal(k_x, (batch, input_dim), jnp.float32)
    out = jax.block_until_ready(mlp_forward(x, *params))
    ref = _reference(x, params)
    assert out.shape == (batch, NUM_CLASSES), out.shape
    assert jnp.allclose(out, ref, atol=2e-2, rtol=2e-2), "mismatch vs reference (batch=8)"

    # Ragged batch exercising the grid (multiple row tiles + batch padding).
    batch2 = 300
    x2 = jax.random.normal(jax.random.fold_in(k_x, 1), (batch2, input_dim), jnp.float32)
    out2 = jax.block_until_ready(mlp_forward(x2, *params, block_m=128))
    ref2 = _reference(x2, params)
    assert out2.shape == (batch2, NUM_CLASSES), out2.shape
    assert jnp.allclose(out2, ref2, atol=2e-2, rtol=2e-2), "mismatch vs reference (batch=300)"

    print("KERNEL_OK")
</pallas_src>

<mosaic_0001>
module attributes {stable_mosaic.version = 11 : i64} {
  func.func @_mlp_kernel(%arg0: i32, %arg1: memref<8x128xbf16, #tpu.memory_space<vmem>>, %arg2: memref<128x512xbf16, #tpu.memory_space<vmem>>, %arg3: memref<1x512xf32, #tpu.memory_space<vmem>>, %arg4: memref<512x256xbf16, #tpu.memory_space<vmem>>, %arg5: memref<1x256xf32, #tpu.memory_space<vmem>>, %arg6: memref<256x1536xbf16, #tpu.memory_space<vmem>>, %arg7: memref<1x1536xf32, #tpu.memory_space<vmem>>, %arg8: memref<8x1536xf32, #tpu.memory_space<vmem>>) attributes {dimension_semantics = [#tpu.dimension_semantics<parallel>], iteration_bounds = array<i64: 1>, scalar_prefetch = 0 : i64, scratch_operands = 0 : i64, tpu.core_type = #tpu.core_type<tc>, window_params = [{transform_indices = @transform_0, window_bounds = array<i64: 8, 128>}, {pipeline_mode = #tpu.pipeline_mode<synchronous>, transform_indices = @transform_1, window_bounds = array<i64: 128, 512>}, {pipeline_mode = #tpu.pipeline_mode<synchronous>, transform_indices = @transform_2, window_bounds = array<i64: 1, 512>}, {pipeline_mode = #tpu.pipeline_mode<synchronous>, transform_indices = @transform_3, window_bounds = array<i64: 512, 256>}, {pipeline_mode = #tpu.pipeline_mode<synchronous>, transform_indices = @transform_4, window_bounds = array<i64: 1, 256>}, {pipeline_mode = #tpu.pipeline_mode<synchronous>, transform_indices = @transform_5, window_bounds = array<i64: 256, 1536>}, {pipeline_mode = #tpu.pipeline_mode<synchronous>, transform_indices = @transform_6, window_bounds = array<i64: 1, 1536>}, {transform_indices = @transform_7, window_bounds = array<i64: 8, 1536>}]} {
    %c0 = arith.constant 0 : index
    %c0_0 = arith.constant 0 : index
    %0 = vector.load %arg1[%c0, %c0_0] : memref<8x128xbf16, #tpu.memory_space<vmem>>, vector<8x128xbf16>
    %c0_1 = arith.constant 0 : index
    %c0_2 = arith.constant 0 : index
    %1 = vector.load %arg2[%c0_1, %c0_2] : memref<128x512xbf16, #tpu.memory_space<vmem>>, vector<128x512xbf16>
    %cst = arith.constant dense<0.000000e+00> : vector<8x512xf32>
    %2 = tpu.matmul %0, %1, %cst {dimension_numbers = #tpu.dot_dimension_numbers<[1], [0], [0], [1], [0, 0, 1, 1], [], []>} : vector<8x128xbf16>, vector<128x512xbf16>, vector<8x512xf32> -> vector<8x512xf32>
    %c0_3 = arith.constant 0 : index
    %c0_4 = arith.constant 0 : index
    %3 = vector.load %arg3[%c0_3, %c0_4] : memref<1x512xf32, #tpu.memory_space<vmem>>, vector<1x512xf32>
    %4 = vector.broadcast %3 : vector<1x512xf32> to vector<8x512xf32>
    %5 = arith.addf %2, %4 : vector<8x512xf32>
    %cst_5 = arith.constant 0.000000e+00 : f32
    %6 = vector.broadcast %cst_5 : f32 to vector<8x512xf32>
    %7 = arith.maximumf %5, %6 : vector<8x512xf32>
    %8 = arith.truncf %7 : vector<8x512xf32> to vector<8x512xbf16>
    %c0_6 = arith.constant 0 : index
    %c0_7 = arith.constant 0 : index
    %9 = vector.load %arg4[%c0_6, %c0_7] : memref<512x256xbf16, #tpu.memory_space<vmem>>, vector<512x256xbf16>
    %cst_8 = arith.constant dense<0.000000e+00> : vector<8x256xf32>
    %10 = tpu.matmul %8, %9, %cst_8 {dimension_numbers = #tpu.dot_dimension_numbers<[1], [0], [0], [1], [0, 0, 1, 1], [], []>} : vector<8x512xbf16>, vector<512x256xbf16>, vector<8x256xf32> -> vector<8x256xf32>
    %c0_9 = arith.constant 0 : index
    %c0_10 = arith.constant 0 : index
    %11 = vector.load %arg5[%c0_9, %c0_10] : memref<1x256xf32, #tpu.memory_space<vmem>>, vector<1x256xf32>
    %12 = vector.broadcast %11 : vector<1x256xf32> to vector<8x256xf32>
    %13 = arith.addf %10, %12 : vector<8x256xf32>
    %cst_11 = arith.constant 0.000000e+00 : f32
    %14 = vector.broadcast %cst_11 : f32 to vector<8x256xf32>
    %15 = arith.maximumf %13, %14 : vector<8x256xf32>
    %16 = arith.truncf %15 : vector<8x256xf32> to vector<8x256xbf16>
    %c0_12 = arith.constant 0 : index
    %c0_13 = arith.constant 0 : index
    %17 = vector.load %arg6[%c0_12, %c0_13] : memref<256x1536xbf16, #tpu.memory_space<vmem>>, vector<256x1536xbf16>
    %cst_14 = arith.constant dense<0.000000e+00> : vector<8x1536xf32>
    %18 = tpu.matmul %16, %17, %cst_14 {dimension_numbers = #tpu.dot_dimension_numbers<[1], [0], [0], [1], [0, 0, 1, 1], [], []>} : vector<8x256xbf16>, vector<256x1536xbf16>, vector<8x1536xf32> -> vector<8x1536xf32>
    %c0_15 = arith.constant 0 : index
    %c0_16 = arith.constant 0 : index
    %19 = vector.load %arg7[%c0_15, %c0_16] : memref<1x1536xf32, #tpu.memory_space<vmem>>, vector<1x1536xf32>
    %20 = vector.broadcast %19 : vector<1x1536xf32> to vector<8x1536xf32>
    %21 = arith.addf %18, %20 : vector<8x1536xf32>
    %c0_17 = arith.constant 0 : index
    %c0_18 = arith.constant 0 : index
    %22 = vector.load %arg8[%c0_17, %c0_18] : memref<8x1536xf32, #tpu.memory_space<vmem>>, vector<8x1536xf32>
    tpu.vector_store %arg8[%c0_17, %c0_18], %21 {strides = array<i32>} : memref<8x1536xf32, #tpu.memory_space<vmem>>, vector<8x1536xf32>,
    return
  }
  func.func @transform_0(%arg0: i32) -> (i32, i32) {
    %c0_i32 = arith.constant 0 : i32
    %c0_i32_0 = arith.constant 0 : i32
    return %arg0, %c0_i32 : i32, i32
  }
  func.func @transform_1(%arg0: i32) -> (i32, i32) {
    %c0_i32 = arith.constant 0 : i32
    %c0_i32_0 = arith.constant 0 : i32
    %c0_i32_1 = arith.constant 0 : i32
    return %c0_i32, %c0_i32_0 : i32, i32
  }
  func.func @transform_2(%arg0: i32) -> (i32, i32) {
    %c0_i32 = arith.constant 0 : i32
    %c0_i32_0 = arith.constant 0 : i32
    %c0_i32_1 = arith.constant 0 : i32
    return %c0_i32, %c0_i32_0 : i32, i32
  }
  func.func @transform_3(%arg0: i32) -> (i32, i32) {
    %c0_i32 = arith.constant 0 : i32
    %c0_i32_0 = arith.constant 0 : i32
    %c0_i32_1 = arith.constant 0 : i32
    return %c0_i32, %c0_i32_0 : i32, i32
  }
  func.func @transform_4(%arg0: i32) -> (i32, i32) {
    %c0_i32 = arith.constant 0 : i32
    %c0_i32_0 = arith.constant 0 : i32
    %c0_i32_1 = arith.constant 0 : i32
    return %c0_i32, %c0_i32_0 : i32, i32
  }
  func.func @transform_5(%arg0: i32) -> (i32, i32) {
    %c0_i32 = arith.constant 0 : i32
    %c0_i32_0 = arith.constant 0 : i32
    %c0_i32_1 = arith.constant 0 : i32
    return %c0_i32, %c0_i32_0 : i32, i32
  }
  func.func @transform_6(%arg0: i32) -> (i32, i32) {
    %c0_i32 = arith.constant 0 : i32
    %c0_i32_0 = arith.constant 0 : i32
    %c0_i32_1 = arith.constant 0 : i32
    return %c0_i32, %c0_i32_0 : i32, i32
  }
  func.func @transform_7(%arg0: i32) -> (i32, i32) {
    %c0_i32 = arith.constant 0 : i32
    %c0_i32_0 = arith.constant 0 : i32
    return %arg0, %c0_i32 : i32, i32
  }
}

</mosaic_0001>

<llo_original>
// kernel: mlp_forward.1
$region0: #{mlp_forward.1}
  #allocation0 [shape = 'u32[]', space=smem, size = 0x4, offset = 0x4, fixed_abs, tag = 'smem constant byte address 0x4 - core index']
  #allocation1 [shape = 'u32[72,128]{1,0:T(1,128)}', space=vmem, size = 0x9000, scoped, tag = 'internal scratch']
  %s0 = inlined_call_operand.vmem [shape: bf16[8,128], index: 0, kind: input, shape index: {}]
  %s1 = inlined_call_operand.vmem [shape: bf16[128,512], index: 1, kind: input, shape index: {}]
  %s2 = inlined_call_operand.vmem [shape: f32[1,512], index: 2, kind: input, shape index: {}]
  %s3 = inlined_call_operand.vmem [shape: bf16[512,256], index: 3, kind: input, shape index: {}]
  %s4 = inlined_call_operand.vmem [shape: f32[1,256], index: 4, kind: input, shape index: {}]
  %s5 = inlined_call_operand.vmem [shape: bf16[256,1536], index: 5, kind: input, shape index: {}]
  %s6 = inlined_call_operand.vmem [shape: f32[1,1536], index: 6, kind: input, shape index: {}]
  %s7 = inlined_call_operand.hbm [shape: f32[8,1536], index: 7, kind: output, shape index: {}]
  %s8 = sld [smem:[#allocation0]]
  $region38: #{mlp_forward.1} parent=0
    _
  %s10 = ssub.s32 1, %s8
  %s11 = scalar_select 0, %s10, %s8
  $region1: #{mlp_forward.1} parent=0
    #allocation2 [shape = 'u8[49152]{0}', space=vmem, size = 0xc000, scoped, tag = 'output window, operand 0, single buffered']
    #allocation3 [shape = 's32[1]{0}', space=sflag, size = 0x4, scoped, tag = 'scoped memory for mlp_forward.1']
    %12 = vsyncpa [#allocation3], 0
    // Predicated region
    $region2: #{mlp_forward.1} parent=1 // pred_check
      _
    $region3: #{mlp_forward.1} parent=1 // pred_check_branch
      %14 = sbr.rel (0) target = $region5
    $region4: #{mlp_forward.1} parent=1 // pred_region
      _
    $region5: #{mlp_forward.1} parent=1 // pred_fallthru
      _
    // Predicated region
    $region6: #{mlp_forward.1} parent=1 // pred_check
      _
    $region7: #{mlp_forward.1} parent=1 // pred_check_branch
      %16 = sbr.rel (0) target = $region9
    $region8: #{mlp_forward.1} parent=1 // pred_region
      _
    $region9: #{mlp_forward.1} parent=1 // pred_fallthru
      _
    // Predicated region
    $region10: #{mlp_forward.1} parent=1 // pred_check
      _
    $region11: #{mlp_forward.1} parent=1 // pred_check_branch
      %18 = sbr.rel (0) target = $region13
    $region12: #{mlp_forward.1} parent=1 // pred_region
      _
    $region13: #{mlp_forward.1} parent=1 // pred_fallthru
      _
    // Predicated region
    $region14: #{mlp_forward.1} parent=1 // pred_check
      _
    $region15: #{mlp_forward.1} parent=1 // pred_check_branch
      %20 = sbr.rel (0) target = $region17
    $region16: #{mlp_forward.1} parent=1 // pred_region
      _
    $region17: #{mlp_forward.1} parent=1 // pred_fallthru
      _
    // Predicated region
    $region18: #{mlp_forward.1} parent=1 // pred_check
      _
    $region19: #{mlp_forward.1} parent=1 // pred_check_branch
      %22 = sbr.rel (0) target = $region21
    $region20: #{mlp_forward.1} parent=1 // pred_region
      _
    $region21: #{mlp_forward.1} parent=1 // pred_fallthru
      _
    // Predicated region
    $region22: #{mlp_forward.1} parent=1 // pred_check
      _
    $region23: #{mlp_forward.1} parent=1 // pred_check_branch
      %24 = sbr.rel (0) target = $region25
    $region24: #{mlp_forward.1} parent=1 // pred_region
      _
    $region25: #{mlp_forward.1} parent=1 // pred_fallthru
      _
    // Predicated region
    $region26: #{mlp_forward.1} parent=1 // pred_check
      _
    $region27: #{mlp_forward.1} parent=1 // pred_check_branch
      %26 = sbr.rel (0) target = $region29
    $region28: #{mlp_forward.1} parent=1 // pred_region
      _
    $region29: #{mlp_forward.1} parent=1 // pred_fallthru
      _
    %v27 = vld [vmem:[%s0] sm:$0xf]
    %v28 = vld [vmem:[%s1] sm:$0xff]
    %v29 = vld [vmem:[%s1 + $0x8] sm:$0xff]
    %v30 = vld [vmem:[%s1 + $0x10] sm:$0xff]
    %v31 = vld [vmem:[%s1 + $0x18] sm:$0xff]
    %v32 = vld [vmem:[%s1 + $0x20] sm:$0xff]
    %v33 = vld [vmem:[%s1 + $0x28] sm:$0xff]
    %v34 = vld [vmem:[%s1 + $0x30] sm:$0xff]
    %v35 = vld [vmem:[%s1 + $0x38] sm:$0xff]
    %v36 = vld [vmem:[%s1 + $0x40] sm:$0xff]
    %v37 = vld [vmem:[%s1 + $0x48] sm:$0xff]
    %v38 = vld [vmem:[%s1 + $0x50] sm:$0xff]
    %v39 = vld [vmem:[%s1 + $0x58] sm:$0xff]
    %v40 = vld [vmem:[%s1 + $0x60] sm:$0xff]
    %v41 = vld [vmem:[%s1 + $0x68] sm:$0xff]
    %v42 = vld [vmem:[%s1 + $0x70] sm:$0xff]
    %v43 = vld [vmem:[%s1 + $0x78] sm:$0xff]
    %v44 = vld [vmem:[%s1 + $0x80] sm:$0xff]
    %v45 = vld [vmem:[%s1 + $0x88] sm:$0xff]
    %v46 = vld [vmem:[%s1 + $0x90] sm:$0xff]
    %v47 = vld [vmem:[%s1 + $0x98] sm:$0xff]
    %v48 = vld [vmem:[%s1 + $0xa0] sm:$0xff]
    %v49 = vld [vmem:[%s1 + $0xa8] sm:$0xff]
    %v50 = vld [vmem:[%s1 + $0xb0] sm:$0xff]
    %v51 = vld [vmem:[%s1 + $0xb8] sm:$0xff]
    %v52 = vld [vmem:[%s1 + $0xc0] sm:$0xff]
    %v53 = vld [vmem:[%s1 + $0xc8] sm:$0xff]
    %v54 = vld [vmem:[%s1 + $0xd0] sm:$0xff]
    %v55 = vld [vmem:[%s1 + $0xd8] sm:$0xff]
    %v56 = vld [vmem:[%s1 + $0xe0] sm:$0xff]
    %v57 = vld [vmem:[%s1 + $0xe8] sm:$0xff]
    %v58 = vld [vmem:[%s1 + $0xf0] sm:$0xff]
    %v59 = vld [vmem:[%s1 + $0xf8] sm:$0xff]
    %v60 = vld [vmem:[%s2] sm:$0xf]
    %v62 = vperm.slane %v60, 0
    %v63 = vperm.slane %v60, 1
    %v64 = vperm.slane %v60, 2
    %v65 = vperm.slane %v60, 3
    %v102 = vunpack.c.l.b16 %v28
    %v103 = vunpack.c.h.b16 %v28
    %v104 = vunpack.c.l.b16 %v29
    %v105 = vunpack.c.h.b16 %v29
    %v106 = vunpack.c.l.b16 %v30
    %v107 = vunpack.c.h.b16 %v30
    %v108 = vunpack.c.l.b16 %v31
    %v109 = vunpack.c.h.b16 %v31
    %v110 = vunpack.c.l.b16 %v32
    %v111 = vunpack.c.h.b16 %v32
    %v112 = vunpack.c.l.b16 %v33
    %v113 = vunpack.c.h.b16 %v33
    %v114 = vunpack.c.l.b16 %v34
    %v115 = vunpack.c.h.b16 %v34
    %v116 = vunpack.c.l.b16 %v35
    %v117 = vunpack.c.h.b16 %v35
    %v118 = vunpack.c.l.b16 %v36
    %v119 = vunpack.c.h.b16 %v36
    %v120 = vunpack.c.l.b16 %v37
    %v121 = vunpack.c.h.b16 %v37
    %v122 = vunpack.c.l.b16 %v38
    %v123 = vunpack.c.h.b16 %v38
    %v124 = vunpack.c.l.b16 %v39
    %v125 = vunpack.c.h.b16 %v39
    %v126 = vunpack.c.l.b16 %v40
    %v127 = vunpack.c.h.b16 %v40
    %v128 = vunpack.c.l.b16 %v41
    %v129 = vunpack.c.h.b16 %v41
    %v130 = vunpack.c.l.b16 %v42
    %v131 = vunpack.c.h.b16 %v42
    %v132 = vunpack.c.l.b16 %v43
    %v133 = vunpack.c.h.b16 %v43
    %v134 = vunpack.c.l.b16 %v44
    %v135 = vunpack.c.h.b16 %v44
    %v136 = vunpack.c.l.b16 %v45
    %v137 = vunpack.c.h.b16 %v45
    %v138 = vunpack.c.l.b16 %v46
    %v139 = vunpack.c.h.b16 %v46
    %v140 = vunpack.c.l.b16 %v47
    %v141 = vunpack.c.h.b16 %v47
    %v142 = vunpack.c.l.b16 %v48
    %v143 = vunpack.c.h.b16 %v48
    %v144 = vunpack.c.l.b16 %v49
    %v145 = vunpack.c.h.b16 %v49
    %v146 = vunpack.c.l.b16 %v50
    %v147 = vunpack.c.h.b16 %v50
    %v148 = vunpack.c.l.b16 %v51
    %v149 = vunpack.c.h.b16 %v51
    %v150 = vunpack.c.l.b16 %v52
    %v151 = vunpack.c.h.b16 %v52
    %v152 = vunpack.c.l.b16 %v53
    %v153 = vunpack.c.h.b16 %v53
    %v154 = vunpack.c.l.b16 %v54
    %v155 = vunpack.c.h.b16 %v54
    %v156 = vunpack.c.l.b16 %v55
    %v157 = vunpack.c.h.b16 %v55
    %v158 = vunpack.c.l.b16 %v56
    %v159 = vunpack.c.h.b16 %v56
    %v160 = vunpack.c.l.b16 %v57
    %v161 = vunpack.c.h.b16 %v57
    %v162 = vunpack.c.l.b16 %v58
    %v163 = vunpack.c.h.b16 %v58
    %v164 = vunpack.c.l.b16 %v59
    %v165 = vunpack.c.h.b16 %v59
    %v166 = vpack.c.b16 %v106, %v102
    %v167 = vpack.c.b16 %v107, %v103
    %v168 = vpack.c.b16 %v108, %v104
    %v169 = vpack.c.b16 %v109, %v105
    %v170 = vpack.c.b16 %v114, %v110
    %v171 = vpack.c.b16 %v115, %v111
    %v172 = vpack.c.b16 %v116, %v112
    %v173 = vpack.c.b16 %v117, %v113
    %v174 = vpack.c.b16 %v122, %v118
    %v175 = vpack.c.b16 %v123, %v119
    %v176 = vpack.c.b16 %v124, %v120
    %v177 = vpack.c.b16 %v125, %v121
    %v178 = vpack.c.b16 %v130, %v126
    %v179 = vpack.c.b16 %v131, %v127
    %v180 = vpack.c.b16 %v132, %v128
    %v181 = vpack.c.b16 %v133, %v129
    %v182 = vpack.c.b16 %v138, %v134
    %v183 = vpack.c.b16 %v139, %v135
    %v184 = vpack.c.b16 %v140, %v136
    %v185 = vpack.c.b16 %v141, %v137
    %v186 = vpack.c.b16 %v146, %v142
    %v187 = vpack.c.b16 %v147, %v143
    %v188 = vpack.c.b16 %v148, %v144
    %v189 = vpack.c.b16 %v149, %v145
    %v190 = vpack.c.b16 %v154, %v150
    %v191 = vpack.c.b16 %v155, %v151
    %v192 = vpack.c.b16 %v156, %v152
    %v193 = vpack.c.b16 %v157, %v153
    %v194 = vpack.c.b16 %v162, %v158
    %v195 = vpack.c.b16 %v163, %v159
    %v196 = vpack.c.b16 %v164, %v160
    %v197 = vpack.c.b16 %v165, %v161
    %230 = vmatpush.bf16.msra.mxu0 %v194
    %231 = vmatpush.bf16.msra.mxu0 %v190
    %232 = vmatpush.bf16.msra.mxu0 %v186
    %233 = vmatpush.bf16.msra.mxu0 %v182
    %234 = vmatpush.bf16.msra.mxu0 %v178
    %235 = vmatpush.bf16.msra.mxu0 %v174
    %236 = vmatpush.bf16.msra.mxu0 %v170
    %237 = vmatpush.bf16.msra.mxu0 %v166
    %238 = vmatmul.bf16.gmra.mxu0 %v27
    %v239 = vpop.f32.mrf.mxu0
    %v240 = vadd.f32 %v62, %v239
    %v241 = vpop.f32.mrf.mxu0
    %242 = vdwg.mxu0
    %243 = vmatpush.bf16.msra.mxu0 %v195
    %244 = vmatpush.bf16.msra.mxu0 %v191
    %245 = vmatpush.bf16.msra.mxu0 %v187
    %246 = vmatpush.bf16.msra.mxu0 %v183
    %247 = vmatpush.bf16.msra.mxu0 %v179
    %248 = vmatpush.bf16.msra.mxu0 %v175
    %249 = vmatpush.bf16.msra.mxu0 %v171
    %250 = vmatpush.bf16.msra.mxu0 %v167
    %251 = vmatmul.bf16.gmra.mxu0 %v27
    %v252 = vpop.f32.mrf.mxu0
    %v253 = vadd.f32 %v63, %v252
    %v254 = vpop.f32.mrf.mxu0
    %255 = vdwg.mxu0
    %256 = vmatpush.bf16.msra.mxu0 %v196
    %257 = vmatpush.bf16.msra.mxu0 %v192
    %258 = vmatpush.bf16.msra.mxu0 %v188
    %259 = vmatpush.bf16.msra.mxu0 %v184
    %260 = vmatpush.bf16.msra.mxu0 %v180
    %261 = vmatpush.bf16.msra.mxu0 %v176
    %262 = vmatpush.bf16.msra.mxu0 %v172
    %263 = vmatpush.bf16.msra.mxu0 %v168
    %264 = vmatmul.bf16.gmra.mxu0 %v27
    %v265 = vpop.f32.mrf.mxu0
    %v266 = vadd.f32 %v64, %v265
    %v267 = vpop.f32.mrf.mxu0
    %268 = vdwg.mxu0
    %269 = vmatpush.bf16.msra.mxu0 %v197
    %270 = vmatpush.bf16.msra.mxu0 %v193
    %271 = vmatpush.bf16.msra.mxu0 %v189
    %272 = vmatpush.bf16.msra.mxu0 %v185
    %273 = vmatpush.bf16.msra.mxu0 %v181
    %274 = vmatpush.bf16.msra.mxu0 %v177
    %275 = vmatpush.bf16.msra.mxu0 %v173
    %276 = vmatpush.bf16.msra.mxu0 %v169
    %277 = vmatmul.bf16.gmra.mxu0 %v27
    %v278 = vpop.f32.mrf.mxu0
    %v279 = vadd.f32 %v65, %v278
    %v280 = vpop.f32.mrf.mxu0
    %281 = vdwg.mxu0
    %v282 = vmax.f32 %v240, 0.0
    %v283 = vmax.f32 %v253, 0.0
    %v284 = vmax.f32 %v266, 0.0
    %v285 = vmax.f32 %v279, 0.0
    %v286 = vpack.c.bf16 %v282, %v282
    %v287 = vpack.c.bf16 %v283, %v283
    %v288 = vpack.c.bf16 %v284, %v284
    %v289 = vpack.c.bf16 %v285, %v285
    %v290 = vld [vmem:[%s3] sm:$0xff]
    %v291 = vld [vmem:[%s3 + $0x8] sm:$0xff]
    %v292 = vld [vmem:[%s3 + $0x10] sm:$0xff]
    %v293 = vld [vmem:[%s3 + $0x18] sm:$0xff]
    %v294 = vld [vmem:[%s3 + $0x20] sm:$0xff]
    %v295 = vld [vmem:[%s3 + $0x28] sm:$0xff]
    %v296 = vld [vmem:[%s3 + $0x30] sm:$0xff]
    %v297 = vld [vmem:[%s3 + $0x38] sm:$0xff]
    %v298 = vld [vmem:[%s3 + $0x40] sm:$0xff]
    %v299 = vld [vmem:[%s3 + $0x48] sm:$0xff]
    %v300 = vld [vmem:[%s3 + $0x50] sm:$0xff]
    %v301 = vld [vmem:[%s3 + $0x58] sm:$0xff]
    %v302 = vld [vmem:[%s3 + $0x60] sm:$0xff]
    %v303 = vld [vmem:[%s3 + $0x68] sm:$0xff]
    %v304 = vld [vmem:[%s3 + $0x70] sm:$0xff]
    %v305 = vld [vmem:[%s3 + $0x78] sm:$0xff]
    %v306 = vld [vmem:[%s3 + $0x80] sm:$0xff]
    %v307 = vld [vmem:[%s3 + $0x88] sm:$0xff]
    %v308 = vld [vmem:[%s3 + $0x90] sm:$0xff]
    %v309 = vld [vmem:[%s3 + $0x98] sm:$0xff]
    %v310 = vld [vmem:[%s3 + $0xa0] sm:$0xff]
    %v311 = vld [vmem:[%s3 + $0xa8] sm:$0xff]
    %v312 = vld [vmem:[%s3 + $0xb0] sm:$0xff]
    %v313 = vld [vmem:[%s3 + $0xb8] sm:$0xff]
    %v314 = vld [vmem:[%s3 + $0xc0] sm:$0xff]
    %v315 = vld [vmem:[%s3 + $0xc8] sm:$0xff]
    %v316 = vld [vmem:[%s3 + $0xd0] sm:$0xff]
    %v317 = vld [vmem:[%s3 + $0xd8] sm:$0xff]
    %v318 = vld [vmem:[%s3 + $0xe0] sm:$0xff]
    %v319 = vld [vmem:[%s3 + $0xe8] sm:$0xff]
    %v320 = vld [vmem:[%s3 + $0xf0] sm:$0xff]
    %v321 = vld [vmem:[%s3 + $0xf8] sm:$0xff]
    %v322 = vld [vmem:[%s3 + $0x100] sm:$0xff]
    %v323 = vld [vmem:[%s3 + $0x108] sm:$0xff]
    %v324 = vld [vmem:[%s3 + $0x110] sm:$0xff]
    %v325 = vld [vmem:[%s3 + $0x118] sm:$0xff]
    %v326 = vld [vmem:[%s3 + $0x120] sm:$0xff]
    %v327 = vld [vmem:[%s3 + $0x128] sm:$0xff]
    %v328 = vld [vmem:[%s3 + $0x130] sm:$0xff]
    %v329 = vld [vmem:[%s3 + $0x138] sm:$0xff]
    %v330 = vld [vmem:[%s3 + $0x140] sm:$0xff]
    %v331 = vld [vmem:[%s3 + $0x148] sm:$0xff]
    %v332 = vld [vmem:[%s3 + $0x150] sm:$0xff]
    %v333 = vld [vmem:[%s3 + $0x158] sm:$0xff]
    %v334 = vld [vmem:[%s3 + $0x160] sm:$0xff]
    %v335 = vld [vmem:[%s3 + $0x168] sm:$0xff]
    %v336 = vld [vmem:[%s3 + $0x170] sm:$0xff]
    %v337 = vld [vmem:[%s3 + $0x178] sm:$0xff]
    %v338 = vld [vmem:[%s3 + $0x180] sm:$0xff]
    %v339 = vld [vmem:[%s3 + $0x188] sm:$0xff]
    %v340 = vld [vmem:[%s3 + $0x190] sm:$0xff]
    %v341 = vld [vmem:[%s3 + $0x198] sm:$0xff]
    %v342 = vld [vmem:[%s3 + $0x1a0] sm:$0xff]
    %v343 = vld [vmem:[%s3 + $0x1a8] sm:$0xff]
    %v344 = vld [vmem:[%s3 + $0x1b0] sm:$0xff]
    %v345 = vld [vmem:[%s3 + $0x1b8] sm:$0xff]
    %v346 = vld [vmem:[%s3 + $0x1c0] sm:$0xff]
    %v347 = vld [vmem:[%s3 + $0x1c8] sm:$0xff]
    %v348 = vld [vmem:[%s3 + $0x1d0] sm:$0xff]
    %v349 = vld [vmem:[%s3 + $0x1d8] sm:$0xff]
    %v350 = vld [vmem:[%s3 + $0x1e0] sm:$0xff]
    %v351 = vld [vmem:[%s3 + $0x1e8] sm:$0xff]
    %v352 = vld [vmem:[%s3 + $0x1f0] sm:$0xff]
    %v353 = vld [vmem:[%s3 + $0x1f8] sm:$0xff]
    %v354 = vld [vmem:[%s4] sm:$0x3]
    %v356 = vperm.slane %v354, 0
    %v357 = vperm.slane %v354, 1
    %v424 = vunpack.c.l.b16 %v290
    %v425 = vunpack.c.h.b16 %v290
    %v426 = vunpack.c.l.b16 %v291
    %v427 = vunpack.c.h.b16 %v291
    %v428 = vunpack.c.l.b16 %v292
    %v429 = vunpack.c.h.b16 %v292
    %v430 = vunpack.c.l.b16 %v293
    %v431 = vunpack.c.h.b16 %v293
    %v432 = vunpack.c.l.b16 %v294
    %v433 = vunpack.c.h.b16 %v294
    %v434 = vunpack.c.l.b16 %v295
    %v435 = vunpack.c.h.b16 %v295
    %v436 = vunpack.c.l.b16 %v296
    %v437 = vunpack.c.h.b16 %v296
    %v438 = vunpack.c.l.b16 %v297
    %v439 = vunpack.c.h.b16 %v297
    %v440 = vunpack.c.l.b16 %v298
    %v441 = vunpack.c.h.b16 %v298
    %v442 = vunpack.c.l.b16 %v299
    %v443 = vunpack.c.h.b16 %v299
    %v444 = vunpack.c.l.b16 %v300
    %v445 = vunpack.c.h.b16 %v300
    %v446 = vunpack.c.l.b16 %v301
    %v447 = vunpack.c.h.b16 %v301
    %v448 = vunpack.c.l.b16 %v302
    %v449 = vunpack.c.h.b16 %v302
    %v450 = vunpack.c.l.b16 %v303
    %v451 = vunpack.c.h.b16 %v303
    %v452 = vunpack.c.l.b16 %v304
    %v453 = vunpack.c.h.b16 %v304
    %v454 = vunpack.c.l.b16 %v305
    %v455 = vunpack.c.h.b16 %v305
    %v456 = vunpack.c.l.b16 %v306
    %v457 = vunpack.c.h.b16 %v306
    %v458 = vunpack.c.l.b16 %v307
    %v459 = vunpack.c.h.b16 %v307
    %v460 = vunpack.c.l.b16 %v308
    %v461 = vunpack.c.h.b16 %v308
    %v462 = vunpack.c.l.b16 %v309
    %v463 = vunpack.c.h.b16 %v309
    %v464 = vunpack.c.l.b16 %v310
    %v465 = vunpack.c.h.b16 %v310
    %v466 = vunpack.c.l.b16 %v311
    %v467 = vunpack.c.h.b16 %v311
    %v468 = vunpack.c.l.b16 %v312
    %v469 = vunpack.c.h.b16 %v312
    %v470 = vunpack.c.l.b16 %v313
    %v471 = vunpack.c.h.b16 %v313
    %v472 = vunpack.c.l.b16 %v314
    %v473 = vunpack.c.h.b16 %v314
    %v474 = vunpack.c.l.b16 %v315
    %v475 = vunpack.c.h.b16 %v315
    %v476 = vunpack.c.l.b16 %v316
    %v477 = vunpack.c.h.b16 %v316
    %v478 = vunpack.c.l.b16 %v317
    %v479 = vunpack.c.h.b16 %v317
    %v480 = vunpack.c.l.b16 %v318
    %v481 = vunpack.c.h.b16 %v318
    %v482 = vunpack.c.l.b16 %v319
    %v483 = vunpack.c.h.b16 %v319
    %v484 = vunpack.c.l.b16 %v320
    %v485 = vunpack.c.h.b16 %v320
    %v486 = vunpack.c.l.b16 %v321
    %v487 = vunpack.c.h.b16 %v321
    %v488 = vunpack.c.l.b16 %v322
    %v489 = vunpack.c.h.b16 %v322
    %v490 = vunpack.c.l.b16 %v323
    %v491 = vunpack.c.h.b16 %v323
    %v492 = vunpack.c.l.b16 %v324
    %v493 = vunpack.c.h.b16 %v324
    %v494 = vunpack.c.l.b16 %v325
    %v495 = vunpack.c.h.b16 %v325
    %v496 = vunpack.c.l.b16 %v326
    %v497 = vunpack.c.h.b16 %v326
    %v498 = vunpack.c.l.b16 %v327
    %v499 = vunpack.c.h.b16 %v327
    %v500 = vunpack.c.l.b16 %v328
    %v501 = vunpack.c.h.b16 %v328
    %v502 = vunpack.c.l.b16 %v329
    %v503 = vunpack.c.h.b16 %v329
    %v504 = vunpack.c.l.b16 %v330
    %v505 = vunpack.c.h.b16 %v330
    %v506 = vunpack.c.l.b16 %v331
    %v507 = vunpack.c.h.b16 %v331
    %v508 = vunpack.c.l.b16 %v332
    %v509 = vunpack.c.h.b16 %v332
    %v510 = vunpack.c.l.b16 %v333
    %v511 = vunpack.c.h.b16 %v333
    %v512 = vunpack.c.l.b16 %v334
    %v513 = vunpack.c.h.b16 %v334
    %v514 = vunpack.c.l.b16 %v335
    %v515 = vunpack.c.h.b16 %v335
    %v516 = vunpack.c.l.b16 %v336
    %v517 = vunpack.c.h.b16 %v336
    %v518 = vunpack.c.l.b16 %v337
    %v519 = vunpack.c.h.b16 %v337
    %v520 = vunpack.c.l.b16 %v338
    %v521 = vunpack.c.h.b16 %v338
    %v522 = vunpack.c.l.b16 %v339
    %v523 = vunpack.c.h.b16 %v339
    %v524 = vunpack.c.l.b16 %v340
    %v525 = vunpack.c.h.b16 %v340
    %v526 = vunpack.c.l.b16 %v341
    %v527 = vunpack.c.h.b16 %v341
    %v528 = vunpack.c.l.b16 %v342
    %v529 = vunpack.c.h.b16 %v342
    %v530 = vunpack.c.l.b16 %v343
    %v531 = vunpack.c.h.b16 %v343
    %v532 = vunpack.c.l.b16 %v344
    %v533 = vunpack.c.h.b16 %v344
    %v534 = vunpack.c.l.b16 %v345
    %v535 = vunpack.c.h.b16 %v345
    %v536 = vunpack.c.l.b16 %v346
    %v537 = vunpack.c.h.b16 %v346
    %v538 = vunpack.c.l.b16 %v347
    %v539 = vunpack.c.h.b16 %v347
    %v540 = vunpack.c.l.b16 %v348
    %v541 = vunpack.c.h.b16 %v348
    %v542 = vunpack.c.l.b16 %v349
    %v543 = vunpack.c.h.b16 %v349
    %v544 = vunpack.c.l.b16 %v350
    %v545 = vunpack.c.h.b16 %v350
    %v546 = vunpack.c.l.b16 %v351
    %v547 = vunpack.c.h.b16 %v351
    %v548 = vunpack.c.l.b16 %v352
    %v549 = vunpack.c.h.b16 %v352
    %v550 = vunpack.c.l.b16 %v353
    %v551 = vunpack.c.h.b16 %v353
    %v552 = vpack.c.b16 %v426, %v424
    %v553 = vpack.c.b16 %v427, %v425
    %v554 = vpack.c.b16 %v430, %v428
    %v555 = vpack.c.b16 %v431, %v429
    %v556 = vpack.c.b16 %v434, %v432
    %v557 = vpack.c.b16 %v435, %v433
    %v558 = vpack.c.b16 %v438, %v436
    %v559 = vpack.c.b16 %v439, %v437
    %v560 = vpack.c.b16 %v442, %v440
    %v561 = vpack.c.b16 %v443, %v441
    %v562 = vpack.c.b16 %v446, %v444
    %v563 = vpack.c.b16 %v447, %v445
    %v564 = vpack.c.b16 %v450, %v448
    %v565 = vpack.c.b16 %v451, %v449
    %v566 = vpack.c.b16 %v454, %v452
    %v567 = vpack.c.b16 %v455, %v453
    %v568 = vpack.c.b16 %v458, %v456
    %v569 = vpack.c.b16 %v459, %v457
    %v570 = vpack.c.b16 %v462, %v460
    %v571 = vpack.c.b16 %v463, %v461
    %v572 = vpack.c.b16 %v466, %v464
    %v573 = vpack.c.b16 %v467, %v465
    %v574 = vpack.c.b16 %v470, %v468
    %v575 = vpack.c.b16 %v471, %v469
    %v576 = vpack.c.b16 %v474, %v472
    %v577 = vpack.c.b16 %v475, %v473
    %v578 = vpack.c.b16 %v478, %v476
    %v579 = vpack.c.b16 %v479, %v477
    %v580 = vpack.c.b16 %v482, %v480
    %v581 = vpack.c.b16 %v483, %v481
    %v582 = vpack.c.b16 %v486, %v484
    %v583 = vpack.c.b16 %v487, %v485
    %v584 = vpack.c.b16 %v490, %v488
    %v585 = vpack.c.b16 %v491, %v489
    %v586 = vpack.c.b16 %v494, %v492
    %v587 = vpack.c.b16 %v495, %v493
    %v588 = vpack.c.b16 %v498, %v496
    %v589 = vpack.c.b16 %v499, %v497
    %v590 = vpack.c.b16 %v502, %v500
    %v591 = vpack.c.b16 %v503, %v501
    %v592 = vpack.c.b16 %v506, %v504
    %v593 = vpack.c.b16 %v507, %v505
    %v594 = vpack.c.b16 %v510, %v508
    %v595 = vpack.c.b16 %v511, %v509
    %v596 = vpack.c.b16 %v514, %v512
    %v597 = vpack.c.b16 %v515, %v513
    %v598 = vpack.c.b16 %v518, %v516
    %v599 = vpack.c.b16 %v519, %v517
    %v600 = vpack.c.b16 %v522, %v520
    %v601 = vpack.c.b16 %v523, %v521
    %v602 = vpack.c.b16 %v526, %v524
    %v603 = vpack.c.b16 %v527, %v525
    %v604 = vpack.c.b16 %v530, %v528
    %v605 = vpack.c.b16 %v531, %v529
    %v606 = vpack.c.b16 %v534, %v532
    %v607 = vpack.c.b16 %v535, %v533
    %v608 = vpack.c.b16 %v538, %v536
    %v609 = vpack.c.b16 %v539, %v537
    %v610 = vpack.c.b16 %v542, %v540
    %v611 = vpack.c.b16 %v543, %v541
    %v612 = vpack.c.b16 %v546, %v544
    %v613 = vpack.c.b16 %v547, %v545
    %v614 = vpack.c.b16 %v550, %v548
    %v615 = vpack.c.b16 %v551, %v549
    %680 = vmatpush.bf16.msra.mxu0 %v566
    %681 = vmatpush.bf16.msra.mxu0 %v564
    %682 = vmatpush.bf16.msra.mxu0 %v562
    %683 = vmatpush.bf16.msra.mxu0 %v560
    %684 = vmatpush.bf16.msra.mxu0 %v558
    %685 = vmatpush.bf16.msra.mxu0 %v556
    %686 = vmatpush.bf16.msra.mxu0 %v554
    %687 = vmatpush.bf16.msra.mxu0 %v552
    %688 = vmatmul.bf16.gmra.mxu0 %v286
    %v689 = vpop.f32.mrf.mxu0
    %v690 = vadd.f32 %v356, %v689
    %v691 = vpop.f32.mrf.mxu0
    %692 = vdwg.mxu0
    %693 = vmatpush.bf16.msra.mxu0 %v582
    %694 = vmatpush.bf16.msra.mxu0 %v580
    %695 = vmatpush.bf16.msra.mxu0 %v578
    %696 = vmatpush.bf16.msra.mxu0 %v576
    %697 = vmatpush.bf16.msra.mxu0 %v574
    %698 = vmatpush.bf16.msra.mxu0 %v572
    %699 = vmatpush.bf16.msra.mxu0 %v570
    %700 = vmatpush.bf16.msra.mxu0 %v568
    %701 = vmatmul.bf16.gmra.mxu0 %v287
    %v702 = vpop.f32.mrf.mxu0
    %v703 = vadd.f32 %v690, %v702
    %v704 = vpop.f32.mrf.mxu0
    %705 = vdwg.mxu0
    %706 = vmatpush.bf16.msra.mxu0 %v598
    %707 = vmatpush.bf16.msra.mxu0 %v596
    %708 = vmatpush.bf16.msra.mxu0 %v594
    %709 = vmatpush.bf16.msra.mxu0 %v592
    %710 = vmatpush.bf16.msra.mxu0 %v590
    %711 = vmatpush.bf16.msra.mxu0 %v588
    %712 = vmatpush.bf16.msra.mxu0 %v586
    %713 = vmatpush.bf16.msra.mxu0 %v584
    %714 = vmatmul.bf16.gmra.mxu0 %v288
    %v715 = vpop.f32.mrf.mxu0
    %v716 = vadd.f32 %v703, %v715
    %v717 = vpop.f32.mrf.mxu0
    %718 = vdwg.mxu0
    %719 = vmatpush.bf16.msra.mxu0 %v614
    %720 = vmatpush.bf16.msra.mxu0 %v612
    %721 = vmatpush.bf16.msra.mxu0 %v610
    %722 = vmatpush.bf16.msra.mxu0 %v608
    %723 = vmatpush.bf16.msra.mxu0 %v606
    %724 = vmatpush.bf16.msra.mxu0 %v604
    %725 = vmatpush.bf16.msra.mxu0 %v602
    %726 = vmatpush.bf16.msra.mxu0 %v600
    %727 = vmatmul.bf16.gmra.mxu0 %v289
    %v728 = vpop.f32.mrf.mxu0
    %v729 = vadd.f32 %v716, %v728
    %v730 = vpop.f32.mrf.mxu0
    %731 = vdwg.mxu0
    %732 = vmatpush.bf16.msra.mxu0 %v567
    %733 = vmatpush.bf16.msra.mxu0 %v565
    %734 = vmatpush.bf16.msra.mxu0 %v563
    %735 = vmatpush.bf16.msra.mxu0 %v561
    %736 = vmatpush.bf16.msra.mxu0 %v559
    %737 = vmatpush.bf16.msra.mxu0 %v557
    %738 = vmatpush.bf16.msra.mxu0 %v555
    %739 = vmatpush.bf16.msra.mxu0 %v553
    %740 = vmatmul.bf16.gmra.mxu0 %v286
    %v741 = vpop.f32.mrf.mxu0
    %v742 = vadd.f32 %v357, %v741
    %v743 = vpop.f32.mrf.mxu0
    %744 = vdwg.mxu0
    %745 = vmatpush.bf16.msra.mxu0 %v583
    %746 = vmatpush.bf16.msra.mxu0 %v581
    %747 = vmatpush.bf16.msra.mxu0 %v579
    %748 = vmatpush.bf16.msra.mxu0 %v577
    %749 = vmatpush.bf16.msra.mxu0 %v575
    %750 = vmatpush.bf16.msra.mxu0 %v573
    %751 = vmatpush.bf16.msra.mxu0 %v571
    %752 = vmatpush.bf16.msra.mxu0 %v569
    %753 = vmatmul.bf16.gmra.mxu0 %v287
    %v754 = vpop.f32.mrf.mxu0
    %v755 = vadd.f32 %v742, %v754
    %v756 = vpop.f32.mrf.mxu0
    %757 = vdwg.mxu0
    %758 = vmatpush.bf16.msra.mxu0 %v599
    %759 = vmatpush.bf16.msra.mxu0 %v597
    %760 = vmatpush.bf16.msra.mxu0 %v595
    %761 = vmatpush.bf16.msra.mxu0 %v593
    %762 = vmatpush.bf16.msra.mxu0 %v591
    %763 = vmatpush.bf16.msra.mxu0 %v589
    %764 = vmatpush.bf16.msra.mxu0 %v587
    %765 = vmatpush.bf16.msra.mxu0 %v585
    %766 = vmatmul.bf16.gmra.mxu0 %v288
    %v767 = vpop.f32.mrf.mxu0
    %v768 = vadd.f32 %v755, %v767
    %v769 = vpop.f32.mrf.mxu0
    %770 = vdwg.mxu0
    %771 = vmatpush.bf16.msra.mxu0 %v615
    %772 = vmatpush.bf16.msra.mxu0 %v613
    %773 = vmatpush.bf16.msra.mxu0 %v611
    %774 = vmatpush.bf16.msra.mxu0 %v609
    %775 = vmatpush.bf16.msra.mxu0 %v607
    %776 = vmatpush.bf16.msra.mxu0 %v605
    %777 = vmatpush.bf16.msra.mxu0 %v603
    %778 = vmatpush.bf16.msra.mxu0 %v601
    %779 = vmatmul.bf16.gmra.mxu0 %v289
    %v780 = vpop.f32.mrf.mxu0
    %v781 = vadd.f32 %v768, %v780
    %v782 = vpop.f32.mrf.mxu0
    %783 = vdwg.mxu0
    %v784 = vmax.f32 %v729, 0.0
    %v785 = vmax.f32 %v781, 0.0
    %v786 = vpack.c.bf16 %v784, %v784
    %v787 = vpack.c.bf16 %v785, %v785
    %v788 = vld [vmem:[%s5] sm:$0xff]
    %v789 = vld [vmem:[%s5 + $0x8] sm:$0xff]
    %v790 = vld [vmem:[%s5 + $0x10] sm:$0xff]
    %v791 = vld [vmem:[%s5 + $0x18] sm:$0xff]
    %v792 = vld [vmem:[%s5 + $0x20] sm:$0xff]
    %v793 = vld [vmem:[%s5 + $0x28] sm:$0xff]
    %v794 = vld [vmem:[%s5 + $0x30] sm:$0xff]
    %v795 = vld [vmem:[%s5 + $0x38] sm:$0xff]
    %v796 = vld [vmem:[%s5 + $0x40] sm:$0xff]
    %v797 = vld [vmem:[%s5 + $0x48] sm:$0xff]
    %v798 = vld [vmem:[%s5 + $0x50] sm:$0xff]
    %v799 = vld [vmem:[%s5 + $0x58] sm:$0xff]
    %v800 = vld [vmem:[%s5 + $0x60] sm:$0xff]
    %v801 = vld [vmem:[%s5 + $0x68] sm:$0xff]
    %v802 = vld [vmem:[%s5 + $0x70] sm:$0xff]
    %v803 = vld [vmem:[%s5 + $0x78] sm:$0xff]
    %v804 = vld [vmem:[%s5 + $0x80] sm:$0xff]
    %v805 = vld [vmem:[%s5 + $0x88] sm:$0xff]
    %v806 = vld [vmem:[%s5 + $0x90] sm:$0xff]
    %v807 = vld [vmem:[%s5 + $0x98] sm:$0xff]
    %v808 = vld [vmem:[%s5 + $0xa0] sm:$0xff]
    %v809 = vld [vmem:[%s5 + $0xa8] sm:$0xff]
    %v810 = vld [vmem:[%s5 + $0xb0] sm:$0xff]
    %v811 = vld [vmem:[%s5 + $0xb8] sm:$0xff]
    %v812 = vld [vmem:[%s5 + $0xc0] sm:$0xff]
    %v813 = vld [vmem:[%s5 + $0xc8] sm:$0xff]
    %v814 = vld [vmem:[%s5 + $0xd0] sm:$0xff]
    %v815 = vld [vmem:[%s5 + $0xd8] sm:$0xff]
    %v816 = vld [vmem:[%s5 + $0xe0] sm:$0xff]
    %v817 = vld [vmem:[%s5 + $0xe8] sm:$0xff]
    %v818 = vld [vmem:[%s5 + $0xf0] sm:$0xff]
    %v819 = vld [vmem:[%s5 + $0xf8] sm:$0xff]
    %v820 = vld [vmem:[%s5 + $0x100] sm:$0xff]
    %v821 = vld [vmem:[%s5 + $0x108] sm:$0xff]
    %v822 = vld [vmem:[%s5 + $0x110] sm:$0xff]
    %v823 = vld [vmem:[%s5 + $0x118] sm:$0xff]
    %v824 = vld [vmem:[%s5 + $0x120] sm:$0xff]
    %v825 = vld [vmem:[%s5 + $0x128] sm:$0xff]
    %v826 = vld [vmem:[%s5 + $0x130] sm:$0xff]
    %v827 = vld [vmem:[%s5 + $0x138] sm:$0xff]
    %v828 = vld [vmem:[%s5 + $0x140] sm:$0xff]
    %v829 = vld [vmem:[%s5 + $0x148] sm:$0xff]
    %v830 = vld [vmem:[%s5 + $0x150] sm:$0xff]
    %v831 = vld [vmem:[%s5 + $0x158] sm:$0xff]
    %v832 = vld [vmem:[%s5 + $0x160] sm:$0xff]
    %v833 = vld [vmem:[%s5 + $0x168] sm:$0xff]
    %v834 = vld [vmem:[%s5 + $0x170] sm:$0xff]
    %v835 = vld [vmem:[%s5 + $0x178] sm:$0xff]
    %v836 = vld [vmem:[%s5 + $0x180] sm:$0xff]
    %v837 = vld [vmem:[%s5 + $0x188] sm:$0xff]
    %v838 = vld [vmem:[%s5 + $0x190] sm:$0xff]
    %v839 = vld [vmem:[%s5 + $0x198] sm:$0xff]
    %v840 = vld [vmem:[%s5 + $0x1a0] sm:$0xff]
    %v841 = vld [vmem:[%s5 + $0x1a8] sm:$0xff]
    %v842 = vld [vmem:[%s5 + $0x1b0] sm:$0xff]
    %v843 = vld [vmem:[%s5 + $0x1b8] sm:$0xff]
    %v844 = vld [vmem:[%s5 + $0x1c0] sm:$0xff]
    %v845 = vld [vmem:[%s5 + $0x1c8] sm:$0xff]
    %v846 = vld [vmem:[%s5 + $0x1d0] sm:$0xff]
    %v847 = vld [vmem:[%s5 + $0x1d8] sm:$0xff]
    %v848 = vld [vmem:[%s5 + $0x1e0] sm:$0xff]
    %v849 = vld [vmem:[%s5 + $0x1e8] sm:$0xff]
    %v850 = vld [vmem:[%s5 + $0x1f0] sm:$0xff]
    %v851 = vld [vmem:[%s5 + $0x1f8] sm:$0xff]
    %v852 = vld [vmem:[%s5 + $0x200] sm:$0xff]
    %v853 = vld [vmem:[%s5 + $0x208] sm:$0xff]
    %v854 = vld [vmem:[%s5 + $0x210] sm:$0xff]
    %v855 = vld [vmem:[%s5 + $0x218] sm:$0xff]
    %v856 = vld [vmem:[%s5 + $0x220] sm:$0xff]
    %v857 = vld [vmem:[%s5 + $0x228] sm:$0xff]
    %v858 = vld [vmem:[%s5 + $0x230] sm:$0xff]
    %v859 = vld [vmem:[%s5 + $0x238] sm:$0xff]
    %v860 = vld [vmem:[%s5 + $0x240] sm:$0xff]
    %v861 = vld [vmem:[%s5 + $0x248] sm:$0xff]
    %v862 = vld [vmem:[%s5 + $0x250] sm:$0xff]
    %v863 = vld [vmem:[%s5 + $0x258] sm:$0xff]
    %v864 = vld [vmem:[%s5 + $0x260] sm:$0xff]
    %v865 = vld [vmem:[%s5 + $0x268] sm:$0xff]
    %v866 = vld [vmem:[%s5 + $0x270] sm:$0xff]
    %v867 = vld [vmem:[%s5 + $0x278] sm:$0xff]
    %v868 = vld [vmem:[%s5 + $0x280] sm:$0xff]
    %v869 = vld [vmem:[%s5 + $0x288] sm:$0xff]
    %v870 = vld [vmem:[%s5 + $0x290] sm:$0xff]
    %v871 = vld [vmem:[%s5 + $0x298] sm:$0xff]
    %v872 = vld [vmem:[%s5 + $0x2a0] sm:$0xff]
    %v873 = vld [vmem:[%s5 + $0x2a8] sm:$0xff]
    %v874 = vld [vmem:[%s5 + $0x2b0] sm:$0xff]
    %v875 = vld [vmem:[%s5 + $0x2b8] sm:$0xff]
    %v876 = vld [vmem:[%s5 + $0x2c0] sm:$0xff]
    %v877 = vld [vmem:[%s5 + $0x2c8] sm:$0xff]
    %v878 = vld [vmem:[%s5 + $0x2d0] sm:$0xff]
    %v879 = vld [vmem:[%s5 + $0x2d8] sm:$0xff]
    %v880 = vld [vmem:[%s5 + $0x2e0] sm:$0xff]
    %v881 = vld [vmem:[%s5 + $0x2e8] sm:$0xff]
    %v882 = vld [vmem:[%s5 + $0x2f0] sm:$0xff]
    %v883 = vld [vmem:[%s5 + $0x2f8] sm:$0xff]
    %v884 = vld [vmem:[%s5 + $0x300] sm:$0xff]
    %v885 = vld [vmem:[%s5 + $0x308] sm:$0xff]
    %v886 = vld [vmem:[%s5 + $0x310] sm:$0xff]
    %v887 = vld [vmem:[%s5 + $0x318] sm:$0xff]
    %v888 = vld [vmem:[%s5 + $0x320] sm:$0xff]
    %v889 = vld [vmem:[%s5 + $0x328] sm:$0xff]
    %v890 = vld [vmem:[%s5 + $0x330] sm:$0xff]
    %v891 = vld [vmem:[%s5 + $0x338] sm:$0xff]
    %v892 = vld [vmem:[%s5 + $0x340] sm:$0xff]
    %v893 = vld [vmem:[%s5 + $0x348] sm:$0xff]
    %v894 = vld [vmem:[%s5 + $0x350] sm:$0xff]
    %v895 = vld [vmem:[%s5 + $0x358] sm:$0xff]
    %v896 = vld [vmem:[%s5 + $0x360] sm:$0xff]
    %v897 = vld [vmem:[%s5 + $0x368] sm:$0xff]
    %v898 = vld [vmem:[%s5 + $0x370] sm:$0xff]
    %v899 = vld [vmem:[%s5 + $0x378] sm:$0xff]
    %v900 = vld [vmem:[%s5 + $0x380] sm:$0xff]
    %v901 = vld [vmem:[%s5 + $0x388] sm:$0xff]
    %v902 = vld [vmem:[%s5 + $0x390] sm:$0xff]
    %v903 = vld [vmem:[%s5 + $0x398] sm:$0xff]
    %v904 = vld [vmem:[%s5 + $0x3a0] sm:$0xff]
    %v905 = vld [vmem:[%s5 + $0x3a8] sm:$0xff]
    %v906 = vld [vmem:[%s5 + $0x3b0] sm:$0xff]
    %v907 = vld [vmem:[%s5 + $0x3b8] sm:$0xff]
    %v908 = vld [vmem:[%s5 + $0x3c0] sm:$0xff]
    %v909 = vld [vmem:[%s5 + $0x3c8] sm:$0xff]
    %v910 = vld [vmem:[%s5 + $0x3d0] sm:$0xff]
    %v911 = vld [vmem:[%s5 + $0x3d8] sm:$0xff]
    %v912 = vld [vmem:[%s5 + $0x3e0] sm:$0xff]
    %v913 = vld [vmem:[%s5 + $0x3e8] sm:$0xff]
    %v914 = vld [vmem:[%s5 + $0x3f0] sm:$0xff]
    %v915 = vld [vmem:[%s5 + $0x3f8] sm:$0xff]
    %v916 = vld [vmem:[%s5 + $0x400] sm:$0xff]
    %v917 = vld [vmem:[%s5 + $0x408] sm:$0xff]
    %v918 = vld [vmem:[%s5 + $0x410] sm:$0xff]
    %v919 = vld [vmem:[%s5 + $0x418] sm:$0xff]
    %v920 = vld [vmem:[%s5 + $0x420] sm:$0xff]
    %v921 = vld [vmem:[%s5 + $0x428] sm:$0xff]
    %v922 = vld [vmem:[%s5 + $0x430] sm:$0xff]
    %v923 = vld [vmem:[%s5 + $0x438] sm:$0xff]
    %v924 = vld [vmem:[%s5 + $0x440] sm:$0xff]
    %v925 = vld [vmem:[%s5 + $0x448] sm:$0xff]
    %v926 = vld [vmem:[%s5 + $0x450] sm:$0xff]
    %v927 = vld [vmem:[%s5 + $0x458] sm:$0xff]
    %v928 = vld [vmem:[%s5 + $0x460] sm:$0xff]
    %v929 = vld [vmem:[%s5 + $0x468] sm:$0xff]
    %v930 = vld [vmem:[%s5 + $0x470] sm:$0xff]
    %v931 = vld [vmem:[%s5 + $0x478] sm:$0xff]
    %v932 = vld [vmem:[%s5 + $0x480] sm:$0xff]
    %v933 = vld [vmem:[%s5 + $0x488] sm:$0xff]
    %v934 = vld [vmem:[%s5 + $0x490] sm:$0xff]
    %v935 = vld [vmem:[%s5 + $0x498] sm:$0xff]
    %v936 = vld [vmem:[%s5 + $0x4a0] sm:$0xff]
    %v937 = vld [vmem:[%s5 + $0x4a8] sm:$0xff]
    %v938 = vld [vmem:[%s5 + $0x4b0] sm:$0xff]
    %v939 = vld [vmem:[%s5 + $0x4b8] sm:$0xff]
    %v940 = vld [vmem:[%s5 + $0x4c0] sm:$0xff]
    %v941 = vld [vmem:[%s5 + $0x4c8] sm:$0xff]
    %v942 = vld [vmem:[%s5 + $0x4d0] sm:$0xff]
    %v943 = vld [vmem:[%s5 + $0x4d8] sm:$0xff]
    %v944 = vld [vmem:[%s5 + $0x4e0] sm:$0xff]
    %v945 = vld [vmem:[%s5 + $0x4e8] sm:$0xff]
    %v946 = vld [vmem:[%s5 + $0x4f0] sm:$0xff]
    %v947 = vld [vmem:[%s5 + $0x4f8] sm:$0xff]
    %v948 = vld [vmem:[%s5 + $0x500] sm:$0xff]
    %v949 = vld [vmem:[%s5 + $0x508] sm:$0xff]
    %v950 = vld [vmem:[%s5 + $0x510] sm:$0xff]
    %v951 = vld [vmem:[%s5 + $0x518] sm:$0xff]
    %v952 = vld [vmem:[%s5 + $0x520] sm:$0xff]
    %v953 = vld [vmem:[%s5 + $0x528] sm:$0xff]
    %v954 = vld [vmem:[%s5 + $0x530] sm:$0xff]
    %v955 = vld [vmem:[%s5 + $0x538] sm:$0xff]
    %v956 = vld [vmem:[%s5 + $0x540] sm:$0xff]
    %v957 = vld [vmem:[%s5 + $0x548] sm:$0xff]
    %v958 = vld [vmem:[%s5 + $0x550] sm:$0xff]
    %v959 = vld [vmem:[%s5 + $0x558] sm:$0xff]
    %v960 = vld [vmem:[%s5 + $0x560] sm:$0xff]
    %v961 = vld [vmem:[%s5 + $0x568] sm:$0xff]
    %v962 = vld [vmem:[%s5 + $0x570] sm:$0xff]
    %v963 = vld [vmem:[%s5 + $0x578] sm:$0xff]
    %v964 = vld [vmem:[%s5 + $0x580] sm:$0xff]
    %v965 = vld [vmem:[%s5 + $0x588] sm:$0xff]
    %v966 = vld [vmem:[%s5 + $0x590] sm:$0xff]
    %v967 = vld [vmem:[%s5 + $0x598] sm:$0xff]
    %v968 = vld [vmem:[%s5 + $0x5a0] sm:$0xff]
    %v969 = vld [vmem:[%s5 + $0x5a8] sm:$0xff]
    %v970 = vld [vmem:[%s5 + $0x5b0] sm:$0xff]
    %v971 = vld [vmem:[%s5 + $0x5b8] sm:$0xff]
    %v972 = vld [vmem:[%s5 + $0x5c0] sm:$0xff]
    %v973 = vld [vmem:[%s5 + $0x5c8] sm:$0xff]
    %v974 = vld [vmem:[%s5 + $0x5d0] sm:$0xff]
    %v975 = vld [vmem:[%s5 + $0x5d8] sm:$0xff]
    %v976 = vld [vmem:[%s5 + $0x5e0] sm:$0xff]
    %v977 = vld [vmem:[%s5 + $0x5e8] sm:$0xff]
    %v978 = vld [vmem:[%s5 + $0x5f0] sm:$0xff]
    %v979 = vld [vmem:[%s5 + $0x5f8] sm:$0xff]
    %v980 = vld [vmem:[%s6] sm:$0xff]
    %v981 = vld [vmem:[%s6 + $0x8] sm:$0xf]
    %v984 = vperm.slane %v980, 0
    %v985 = vperm.slane %v980, 1
    %v986 = vperm.slane %v980, 2
    %v987 = vperm.slane %v980, 3
    %v988 = vperm.slane %v980, 4
    %v989 = vperm.slane %v980, 5
    %v990 = vperm.slane %v980, 6
    %v991 = vperm.slane %v980, 7
    %v992 = vperm.slane %v981, 0
    %v993 = vperm.slane %v981, 1
    %v994 = vperm.slane %v981, 2
    %v995 = vperm.slane %v981, 3
    %v1200 = vunpack.c.l.b16 %v788
    %v1201 = vunpack.c.h.b16 %v788
    %v1202 = vunpack.c.l.b16 %v789
    %v1203 = vunpack.c.h.b16 %v789
    %v1204 = vunpack.c.l.b16 %v790
    %v1205 = vunpack.c.h.b16 %v790
    %v1206 = vunpack.c.l.b16 %v791
    %v1207 = vunpack.c.h.b16 %v791
    %v1208 = vunpack.c.l.b16 %v792
    %v1209 = vunpack.c.h.b16 %v792
    %v1210 = vunpack.c.l.b16 %v793
    %v1211 = vunpack.c.h.b16 %v793
    %v1212 = vunpack.c.l.b16 %v794
    %v1213 = vunpack.c.h.b16 %v794
    %v1214 = vunpack.c.l.b16 %v795
    %v1215 = vunpack.c.h.b16 %v795
    %v1216 = vunpack.c.l.b16 %v796
    %v1217 = vunpack.c.h.b16 %v796
    %v1218 = vunpack.c.l.b16 %v797
    %v1219 = vunpack.c.h.b16 %v797
    %v1220 = vunpack.c.l.b16 %v798
    %v1221 = vunpack.c.h.b16 %v798
    %v1222 = vunpack.c.l.b16 %v799
    %v1223 = vunpack.c.h.b16 %v799
    %v1224 = vunpack.c.l.b16 %v800
    %v1225 = vunpack.c.h.b16 %v800
    %v1226 = vunpack.c.l.b16 %v801
    %v1227 = vunpack.c.h.b16 %v801
    %v1228 = vunpack.c.l.b16 %v802
    %v1229 = vunpack.c.h.b16 %v802
    %v1230 = vunpack.c.l.b16 %v803
    %v1231 = vunpack.c.h.b16 %v803
    %v1232 = vunpack.c.l.b16 %v804
    %v1233 = vunpack.c.h.b16 %v804
    %v1234 = vunpack.c.l.b16 %v805
    %v1235 = vunpack.c.h.b16 %v805
    %v1236 = vunpack.c.l.b16 %v806
    %v1237 = vunpack.c.h.b16 %v806
    %v1238 = vunpack.c.l.b16 %v807
    %v1239 = vunpack.c.h.b16 %v807
    %v1240 = vunpack.c.l.b16 %v808
    %v1241 = vunpack.c.h.b16 %v808
    %v1242 = vunpack.c.l.b16 %v809
    %v1243 = vunpack.c.h.b16 %v809
    %v1244 = vunpack.c.l.b16 %v810
    %v1245 = vunpack.c.h.b16 %v810
    %v1246 = vunpack.c.l.b16 %v811
    %v1247 = vunpack.c.h.b16 %v811
    %v1248 = vunpack.c.l.b16 %v812
    %v1249 = vunpack.c.h.b16 %v812
    %v1250 = vunpack.c.l.b16 %v813
    %v1251 = vunpack.c.h.b16 %v813
    %v1252 = vunpack.c.l.b16 %v814
    %v1253 = vunpack.c.h.b16 %v814
    %v1254 = vunpack.c.l.b16 %v815
    %v1255 = vunpack.c.h.b16 %v815
    %v1256 = vunpack.c.l.b16 %v816
    %v1257 = vunpack.c.h.b16 %v816
    %v1258 = vunpack.c.l.b16 %v817
    %v1259 = vunpack.c.h.b16 %v817
    %v1260 = vunpack.c.l.b16 %v818
    %v1261 = vunpack.c.h.b16 %v818
    %v1262 = vunpack.c.l.b16 %v819
    %v1263 = vunpack.c.h.b16 %v819
    %v1264 = vunpack.c.l.b16 %v820
    %v1265 = vunpack.c.h.b16 %v820
    %v1266 = vunpack.c.l.b16 %v821
    %v1267 = vunpack.c.h.b16 %v821
    %v1268 = vunpack.c.l.b16 %v822
    %v1269 = vunpack.c.h.b16 %v822
    %v1270 = vunpack.c.l.b16 %v823
    %v1271 = vunpack.c.h.b16 %v823
    %v1272 = vunpack.c.l.b16 %v824
    %v1273 = vunpack.c.h.b16 %v824
    %v1274 = vunpack.c.l.b16 %v825
    %v1275 = vunpack.c.h.b16 %v825
    %v1276 = vunpack.c.l.b16 %v826
    %v1277 = vunpack.c.h.b16 %v826
    %v1278 = vunpack.c.l.b16 %v827
    %v1279 = vunpack.c.h.b16 %v827
    %v1280 = vunpack.c.l.b16 %v828
    %v1281 = vunpack.c.h.b16 %v828
    %v1282 = vunpack.c.l.b16 %v829
    %v1283 = vunpack.c.h.b16 %v829
    %v1284 = vunpack.c.l.b16 %v830
    %v1285 = vunpack.c.h.b16 %v830
    %v1286 = vunpack.c.l.b16 %v831
    %v1287 = vunpack.c.h.b16 %v831
    %v1288 = vunpack.c.l.b16 %v832
    %v1289 = vunpack.c.h.b16 %v832
    %v1290 = vunpack.c.l.b16 %v833
    %v1291 = vunpack.c.h.b16 %v833
    %v1292 = vunpack.c.l.b16 %v834
    %v1293 = vunpack.c.h.b16 %v834
    %v1294 = vunpack.c.l.b16 %v835
    %v1295 = vunpack.c.h.b16 %v835
    %v1296 = vunpack.c.l.b16 %v836
    %v1297 = vunpack.c.h.b16 %v836
    %v1298 = vunpack.c.l.b16 %v837
    %v1299 = vunpack.c.h.b16 %v837
    %v1300 = vunpack.c.l.b16 %v838
    %v1301 = vunpack.c.h.b16 %v838
    %v1302 = vunpack.c.l.b16 %v839
    %v1303 = vunpack.c.h.b16 %v839
    %v1304 = vunpack.c.l.b16 %v840
    %v1305 = vunpack.c.h.b16 %v840
    %v1306 = vunpack.c.l.b16 %v841
    %v1307 = vunpack.c.h.b16 %v841
    %v1308 = vunpack.c.l.b16 %v842
    %v1309 = vunpack.c.h.b16 %v842
    %v1310 = vunpack.c.l.b16 %v843
    %v1311 = vunpack.c.h.b16 %v843
    %v1312 = vunpack.c.l.b16 %v844
    %v1313 = vunpack.c.h.b16 %v844
    %v1314 = vunpack.c.l.b16 %v845
    %v1315 = vunpack.c.h.b16 %v845
    %v1316 = vunpack.c.l.b16 %v846
    %v1317 = vunpack.c.h.b16 %v846
    %v1318 = vunpack.c.l.b16 %v847
    %v1319 = vunpack.c.h.b16 %v847
    %v1320 = vunpack.c.l.b16 %v848
    %v1321 = vunpack.c.h.b16 %v848
    %v1322 = vunpack.c.l.b16 %v849
    %v1323 = vunpack.c.h.b16 %v849
    %v1324 = vunpack.c.l.b16 %v850
    %v1325 = vunpack.c.h.b16 %v850
    %v1326 = vunpack.c.l.b16 %v851
    %v1327 = vunpack.c.h.b16 %v851
    %v1328 = vunpack.c.l.b16 %v852
    %v1329 = vunpack.c.h.b16 %v852
    %v1330 = vunpack.c.l.b16 %v853
    %v1331 = vunpack.c.h.b16 %v853
    %v1332 = vunpack.c.l.b16 %v854
    %v1333 = vunpack.c.h.b16 %v854
    %v1334 = vunpack.c.l.b16 %v855
    %v1335 = vunpack.c.h.b16 %v855
    %v1336 = vunpack.c.l.b16 %v856
    %v1337 = vunpack.c.h.b16 %v856
    %v1338 = vunpack.c.l.b16 %v857
    %v1339 = vunpack.c.h.b16 %v857
    %v1340 = vunpack.c.l.b16 %v858
    %v1341 = vunpack.c.h.b16 %v858
    %v1342 = vunpack.c.l.b16 %v859
    %v1343 = vunpack.c.h.b16 %v859
    %v1344 = vunpack.c.l.b16 %v860
    %v1345 = vunpack.c.h.b16 %v860
    %v1346 = vunpack.c.l.b16 %v861
    %v1347 = vunpack.c.h.b16 %v861
    %v1348 = vunpack.c.l.b16 %v862
    %v1349 = vunpack.c.h.b16 %v862
    %v1350 = vunpack.c.l.b16 %v863
    %v1351 = vunpack.c.h.b16 %v863
    %v1352 = vunpack.c.l.b16 %v864
    %v1353 = vunpack.c.h.b16 %v864
    %v1354 = vunpack.c.l.b16 %v865
    %v1355 = vunpack.c.h.b16 %v865
    %v1356 = vunpack.c.l.b16 %v866
    %v1357 = vunpack.c.h.b16 %v866
    %v1358 = vunpack.c.l.b16 %v867
    %v1359 = vunpack.c.h.b16 %v867
    %v1360 = vunpack.c.l.b16 %v868
    %v1361 = vunpack.c.h.b16 %v868
    %v1362 = vunpack.c.l.b16 %v869
    %v1363 = vunpack.c.h.b16 %v869
    %v1364 = vunpack.c.l.b16 %v870
    %v1365 = vunpack.c.h.b16 %v870
    %v1366 = vunpack.c.l.b16 %v871
    %v1367 = vunpack.c.h.b16 %v871
    %v1368 = vunpack.c.l.b16 %v872
    %v1369 = vunpack.c.h.b16 %v872
    %v1370 = vunpack.c.l.b16 %v873
    %v1371 = vunpack.c.h.b16 %v873
    %v1372 = vunpack.c.l.b16 %v874
    %v1373 = vunpack.c.h.b16 %v874
    %v1374 = vunpack.c.l.b16 %v875
    %v1375 = vunpack.c.h.b16 %v875
    %v1376 = vunpack.c.l.b16 %v876
    %v1377 = vunpack.c.h.b16 %v876
    %v1378 = vunpack.c.l.b16 %v877
    %v1379 = vunpack.c.h.b16 %v877
    %v1380 = vunpack.c.l.b16 %v878
    %v1381 = vunpack.c.h.b16 %v878
    %v1382 = vunpack.c.l.b16 %v879
    %v1383 = vunpack.c.h.b16 %v879
    %v1384 = vunpack.c.l.b16 %v880
    %v1385 = vunpack.c.h.b16 %v880
    %v1386 = vunpack.c.l.b16 %v881
    %v1387 = vunpack.c.h.b16 %v881
    %v1388 = vunpack.c.l.b16 %v882
    %v1389 = vunpack.c.h.b16 %v882
    %v1390 = vunpack.c.l.b16 %v883
    %v1391 = vunpack.c.h.b16 %v883
    %v1392 = vunpack.c.l.b16 %v884
    %v1393 = vunpack.c.h.b16 %v884
    %v1394 = vunpack.c.l.b16 %v885
    %v1395 = vunpack.c.h.b16 %v885
    %v1396 = vunpack.c.l.b16 %v886
    %v1397 = vunpack.c.h.b16 %v886
    %v1398 = vunpack.c.l.b16 %v887
    %v1399 = vunpack.c.h.b16 %v887
    %v1400 = vunpack.c.l.b16 %v888
    %v1401 = vunpack.c.h.b16 %v888
    %v1402 = vunpack.c.l.b16 %v889
    %v1403 = vunpack.c.h.b16 %v889
    %v1404 = vunpack.c.l.b16 %v890
    %v1405 = vunpack.c.h.b16 %v890
    %v1406 = vunpack.c.l.b16 %v891
    %v1407 = vunpack.c.h.b16 %v891
    %v1408 = vunpack.c.l.b16 %v892
    %v1409 = vunpack.c.h.b16 %v892
    %v1410 = vunpack.c.l.b16 %v893
    %v1411 = vunpack.c.h.b16 %v893
    %v1412 = vunpack.c.l.b16 %v894
    %v1413 = vunpack.c.h.b16 %v894
    %v1414 = vunpack.c.l.b16 %v895
    %v1415 = vunpack.c.h.b16 %v895
    %v1416 = vunpack.c.l.b16 %v896
    %v1417 = vunpack.c.h.b16 %v896
    %v1418 = vunpack.c.l.b16 %v897
    %v1419 = vunpack.c.h.b16 %v897
    %v1420 = vunpack.c.l.b16 %v898
    %v1421 = vunpack.c.h.b16 %v898
    %v1422 = vunpack.c.l.b16 %v899
    %v1423 = vunpack.c.h.b16 %v899
    %v1424 = vunpack.c.l.b16 %v900
    %v1425 = vunpack.c.h.b16 %v900
    %v1426 = vunpack.c.l.b16 %v901
    %v1427 = vunpack.c.h.b16 %v901
    %v1428 = vunpack.c.l.b16 %v902
    %v1429 = vunpack.c.h.b16 %v902
    %v1430 = vunpack.c.l.b16 %v903
    %v1431 = vunpack.c.h.b16 %v903
    %v1432 = vunpack.c.l.b16 %v904
    %v1433 = vunpack.c.h.b16 %v904
    %v1434 = vunpack.c.l.b16 %v905
    %v1435 = vunpack.c.h.b16 %v905
    %v1436 = vunpack.c.l.b16 %v906
    %v1437 = vunpack.c.h.b16 %v906
    %v1438 = vunpack.c.l.b16 %v907
    %v1439 = vunpack.c.h.b16 %v907
    %v1440 = vunpack.c.l.b16 %v908
    %v1441 = vunpack.c.h.b16 %v908
    %v1442 = vunpack.c.l.b16 %v909
    %v1443 = vunpack.c.h.b16 %v909
    %v1444 = vunpack.c.l.b16 %v910
    %v1445 = vunpack.c.h.b16 %v910
    %v1446 = vunpack.c.l.b16 %v911
    %v1447 = vunpack.c.h.b16 %v911
    %v1448 = vunpack.c.l.b16 %v912
    %v1449 = vunpack.c.h.b16 %v912
    %v1450 = vunpack.c.l.b16 %v913
    %v1451 = vunpack.c.h.b16 %v913
    %v1452 = vunpack.c.l.b16 %v914
    %v1453 = vunpack.c.h.b16 %v914
    %v1454 = vunpack.c.l.b16 %v915
    %v1455 = vunpack.c.h.b16 %v915
    %v1456 = vunpack.c.l.b16 %v916
    %v1457 = vunpack.c.h.b16 %v916
    %v1458 = vunpack.c.l.b16 %v917
    %v1459 = vunpack.c.h.b16 %v917
    %v1460 = vunpack.c.l.b16 %v918
    %v1461 = vunpack.c.h.b16 %v918
    %v1462 = vunpack.c.l.b16 %v919
    %v1463 = vunpack.c.h.b16 %v919
    %v1464 = vunpack.c.l.b16 %v920
    %v1465 = vunpack.c.h.b16 %v920
    %v1466 = vunpack.c.l.b16 %v921
    %v1467 = vunpack.c.h.b16 %v921
    %v1468 = vunpack.c.l.b16 %v922
    %v1469 = vunpack.c.h.b16 %v922
    %v1470 = vunpack.c.l.b16 %v923
    %v1471 = vunpack.c.h.b16 %v923
    %v1472 = vunpack.c.l.b16 %v924
    %v1473 = vunpack.c.h.b16 %v924
    %v1474 = vunpack.c.l.b16 %v925
    %v1475 = vunpack.c.h.b16 %v925
    %v1476 = vunpack.c.l.b16 %v926
    %v1477 = vunpack.c.h.b16 %v926
    %v1478 = vunpack.c.l.b16 %v927
    %v1479 = vunpack.c.h.b16 %v927
    %v1480 = vunpack.c.l.b16 %v928
    %v1481 = vunpack.c.h.b16 %v928
    %v1482 = vunpack.c.l.b16 %v929
    %v1483 = vunpack.c.h.b16 %v929
    %v1484 = vunpack.c.l.b16 %v930
    %v1485 = vunpack.c.h.b16 %v930
    %v1486 = vunpack.c.l.b16 %v931
    %v1487 = vunpack.c.h.b16 %v931
    %v1488 = vunpack.c.l.b16 %v932
    %v1489 = vunpack.c.h.b16 %v932
    %v1490 = vunpack.c.l.b16 %v933
    %v1491 = vunpack.c.h.b16 %v933
    %v1492 = vunpack.c.l.b16 %v934
    %v1493 = vunpack.c.h.b16 %v934
    %v1494 = vunpack.c.l.b16 %v935
    %v1495 = vunpack.c.h.b16 %v935
    %v1496 = vunpack.c.l.b16 %v936
    %v1497 = vunpack.c.h.b16 %v936
    %v1498 = vunpack.c.l.b16 %v937
    %v1499 = vunpack.c.h.b16 %v937
    %v1500 = vunpack.c.l.b16 %v938
    %v1501 = vunpack.c.h.b16 %v938
    %v1502 = vunpack.c.l.b16 %v939
    %v1503 = vunpack.c.h.b16 %v939
    %v1504 = vunpack.c.l.b16 %v940
    %v1505 = vunpack.c.h.b16 %v940
    %v1506 = vunpack.c.l.b16 %v941
    %v1507 = vunpack.c.h.b16 %v941
    %v1508 = vunpack.c.l.b16 %v942
    %v1509 = vunpack.c.h.b16 %v942
    %v1510 = vunpack.c.l.b16 %v943
    %v1511 = vunpack.c.h.b16 %v943
    %v1512 = vunpack.c.l.b16 %v944
    %v1513 = vunpack.c.h.b16 %v944
    %v1514 = vunpack.c.l.b16 %v945
    %v1515 = vunpack.c.h.b16 %v945
    %v1516 = vunpack.c.l.b16 %v946
    %v1517 = vunpack.c.h.b16 %v946
    %v1518 = vunpack.c.l.b16 %v947
    %v1519 = vunpack.c.h.b16 %v947
    %v1520 = vunpack.c.l.b16 %v948
    %v1521 = vunpack.c.h.b16 %v948
    %v1522 = vunpack.c.l.b16 %v949
    %v1523 = vunpack.c.h.b16 %v949
    %v1524 = vunpack.c.l.b16 %v950
    %v1525 = vunpack.c.h.b16 %v950
    %v1526 = vunpack.c.l.b16 %v951
    %v1527 = vunpack.c.h.b16 %v951
    %v1528 = vunpack.c.l.b16 %v952
    %v1529 = vunpack.c.h.b16 %v952
    %v1530 = vunpack.c.l.b16 %v953
    %v1531 = vunpack.c.h.b16 %v953
    %v1532 = vunpack.c.l.b16 %v954
    %v1533 = vunpack.c.h.b16 %v954
    %v1534 = vunpack.c.l.b16 %v955
    %v1535 = vunpack.c.h.b16 %v955
    %v1536 = vunpack.c.l.b16 %v956
    %v1537 = vunpack.c.h.b16 %v956
    %v1538 = vunpack.c.l.b16 %v957
    %v1539 = vunpack.c.h.b16 %v957
    %v1540 = vunpack.c.l.b16 %v958
    %v1541 = vunpack.c.h.b16 %v958
    %v1542 = vunpack.c.l.b16 %v959
    %v1543 = vunpack.c.h.b16 %v959
    %v1544 = vunpack.c.l.b16 %v960
    %v1545 = vunpack.c.h.b16 %v960
    %v1546 = vunpack.c.l.b16 %v961
    %v1547 = vunpack.c.h.b16 %v961
    %v1548 = vunpack.c.l.b16 %v962
    %v1549 = vunpack.c.h.b16 %v962
    %v1550 = vunpack.c.l.b16 %v963
    %v1551 = vunpack.c.h.b16 %v963
    %v1552 = vunpack.c.l.b16 %v964
    %v1553 = vunpack.c.h.b16 %v964
    %v1554 = vunpack.c.l.b16 %v965
    %v1555 = vunpack.c.h.b16 %v965
    %v1556 = vunpack.c.l.b16 %v966
    %v1557 = vunpack.c.h.b16 %v966
    %v1558 = vunpack.c.l.b16 %v967
    %v1559 = vunpack.c.h.b16 %v967
    %v1560 = vunpack.c.l.b16 %v968
    %v1561 = vunpack.c.h.b16 %v968
    %v1562 = vunpack.c.l.b16 %v969
    %v1563 = vunpack.c.h.b16 %v969
    %v1564 = vunpack.c.l.b16 %v970
    %v1565 = vunpack.c.h.b16 %v970
    %v1566 = vunpack.c.l.b16 %v971
    %v1567 = vunpack.c.h.b16 %v971
    %v1568 = vunpack.c.l.b16 %v972
    %v1569 = vunpack.c.h.b16 %v972
    %v1570 = vunpack.c.l.b16 %v973
    %v1571 = vunpack.c.h.b16 %v973
    %v1572 = vunpack.c.l.b16 %v974
    %v1573 = vunpack.c.h.b16 %v974
    %v1574 = vunpack.c.l.b16 %v975
    %v1575 = vunpack.c.h.b16 %v975
    %v1576 = vunpack.c.l.b16 %v976
    %v1577 = vunpack.c.h.b16 %v976
    %v1578 = vunpack.c.l.b16 %v977
    %v1579 = vunpack.c.h.b16 %v977
    %v1580 = vunpack.c.l.b16 %v978
    %v1581 = vunpack.c.h.b16 %v978
    %v1582 = vunpack.c.l.b16 %v979
    %v1583 = vunpack.c.h.b16 %v979
    %v1584 = vpack.c.b16 %v1212, %v1200
    %v1585 = vpack.c.b16 %v1213, %v1201
    %v1586 = vpack.c.b16 %v1214, %v1202
    %v1587 = vpack.c.b16 %v1215, %v1203
    %v1588 = vpack.c.b16 %v1216, %v1204
    %v1589 = vpack.c.b16 %v1217, %v1205
    %v1590 = vpack.c.b16 %v1218, %v1206
    %v1591 = vpack.c.b16 %v1219, %v1207
    %v1592 = vpack.c.b16 %v1220, %v1208
    %v1593 = vpack.c.b16 %v1221, %v1209
    %v1594 = vpack.c.b16 %v1222, %v1210
    %v1595 = vpack.c.b16 %v1223, %v1211
    %v1596 = vpack.c.b16 %v1236, %v1224
    %v1597 = vpack.c.b16 %v1237, %v1225
    %v1598 = vpack.c.b16 %v1238, %v1226
    %v1599 = vpack.c.b16 %v1239, %v1227
    %v1600 = vpack.c.b16 %v1240, %v1228
    %v1601 = vpack.c.b16 %v1241, %v1229
    %v1602 = vpack.c.b16 %v1242, %v1230
    %v1603 = vpack.c.b16 %v1243, %v1231
    %v1604 = vpack.c.b16 %v1244, %v1232
    %v1605 = vpack.c.b16 %v1245, %v1233
    %v1606 = vpack.c.b16 %v1246, %v1234
    %v1607 = vpack.c.b16 %v1247, %v1235
    %v1608 = vpack.c.b16 %v1260, %v1248
    %v1609 = vpack.c.b16 %v1261, %v1249
    %v1610 = vpack.c.b16 %v1262, %v1250
    %v1611 = vpack.c.b16 %v1263, %v1251
    %v1612 = vpack.c.b16 %v1264, %v1252
    %v1613 = vpack.c.b16 %v1265, %v1253
    %v1614 = vpack.c.b16 %v1266, %v1254
    %v1615 = vpack.c.b16 %v1267, %v1255
    %v1616 = vpack.c.b16 %v1268, %v1256
    %v1617 = vpack.c.b16 %v1269, %v1257
    %v1618 = vpack.c.b16 %v1270, %v1258
    %v1619 = vpack.c.b16 %v1271, %v1259
    %v1620 = vpack.c.b16 %v1284, %v1272
    %v1621 = vpack.c.b16 %v1285, %v1273
    %v1622 = vpack.c.b16 %v1286, %v1274
    %v1623 = vpack.c.b16 %v1287, %v1275
    %v1624 = vpack.c.b16 %v1288, %v1276
    %v1625 = vpack.c.b16 %v1289, %v1277
    %v1626 = vpack.c.b16 %v1290, %v1278
    %v1627 = vpack.c.b16 %v1291, %v1279
    %v1628 = vpack.c.b16 %v1292, %v1280
    %v1629 = vpack.c.b16 %v1293, %v1281
    %v1630 = vpack.c.b16 %v1294, %v1282
    %v1631 = vpack.c.b16 %v1295, %v1283
    %v1632 = vpack.c.b16 %v1308, %v1296
    %v1633 = vpack.c.b16 %v1309, %v1297
    %v1634 = vpack.c.b16 %v1310, %v1298
    %v1635 = vpack.c.b16 %v1311, %v1299
    %v1636 = vpack.c.b16 %v1312, %v1300
    %v1637 = vpack.c.b16 %v1313, %v1301
    %v1638 = vpack.c.b16 %v1314, %v1302
    %v1639 = vpack.c.b16 %v1315, %v1303
    %v1640 = vpack.c.b16 %v1316, %v1304
    %v1641 = vpack.c.b16 %v1317, %v1305
    %v1642 = vpack.c.b16 %v1318, %v1306
    %v1643 = vpack.c.b16 %v1319, %v1307
    %v1644 = vpack.c.b16 %v1332, %v1320
    %v1645 = vpack.c.b16 %v1333, %v1321
    %v1646 = vpack.c.b16 %v1334, %v1322
    %v1647 = vpack.c.b16 %v1335, %v1323
    %v1648 = vpack.c.b16 %v1336, %v1324
    %v1649 = vpack.c.b16 %v1337, %v1325
    %v1650 = vpack.c.b16 %v1338, %v1326
    %v1651 = vpack.c.b16 %v1339, %v1327
    %v1652 = vpack.c.b16 %v1340, %v1328
    %v1653 = vpack.c.b16 %v1341, %v1329
    %v1654 = vpack.c.b16 %v1342, %v1330
    %v1655 = vpack.c.b16 %v1343, %v1331
    %v1656 = vpack.c.b16 %v1356, %v1344
    %v1657 = vpack.c.b16 %v1357, %v1345
    %v1658 = vpack.c.b16 %v1358, %v1346
    %v1659 = vpack.c.b16 %v1359, %v1347
    %v1660 = vpack.c.b16 %v1360, %v1348
    %v1661 = vpack.c.b16 %v1361, %v1349
    %v1662 = vpack.c.b16 %v1362, %v1350
    %v1663 = vpack.c.b16 %v1363, %v1351
    %v1664 = vpack.c.b16 %v1364, %v1352
    %v1665 = vpack.c.b16 %v1365, %v1353
    %v1666 = vpack.c.b16 %v1366, %v1354
    %v1667 = vpack.c.b16 %v1367, %v1355
    %v1668 = vpack.c.b16 %v1380, %v1368
    %v1669 = vpack.c.b16 %v1381, %v1369
    %v1670 = vpack.c.b16 %v1382, %v1370
    %v1671 = vpack.c.b16 %v1383, %v1371
    %v1672 = vpack.c.b16 %v1384, %v1372
    %v1673 = vpack.c.b16 %v1385, %v1373
    %v1674 = vpack.c.b16 %v1386, %v1374
    %v1675 = vpack.c.b16 %v1387, %v1375
    %v1676 = vpack.c.b16 %v1388, %v1376
    %v1677 = vpack.c.b16 %v1389, %v1377
    %v1678 = vpack.c.b16 %v1390, %v1378
    %v1679 = vpack.c.b16 %v1391, %v1379
    %v1680 = vpack.c.b16 %v1404, %v1392
    %v1681 = vpack.c.b16 %v1405, %v1393
    %v1682 = vpack.c.b16 %v1406, %v1394
    %v1683 = vpack.c.b16 %v1407, %v1395
    %v1684 = vpack.c.b16 %v1408, %v1396
    %v1685 = vpack.c.b16 %v1409, %v1397
    %v1686 = vpack.c.b16 %v1410, %v1398
    %v1687 = vpack.c.b16 %v1411, %v1399
    %v1688 = vpack.c.b16 %v1412, %v1400
    %v1689 = vpack.c.b16 %v1413, %v1401
    %v1690 = vpack.c.b16 %v1414, %v1402
    %v1691 = vpack.c.b16 %v1415, %v1403
    %v1692 = vpack.c.b16 %v1428, %v1416
    %v1693 = vpack.c.b16 %v1429, %v1417
    %v1694 = vpack.c.b16 %v1430, %v1418
    %v1695 = vpack.c.b16 %v1431, %v1419
    %v1696 = vpack.c.b16 %v1432, %v1420
    %v1697 = vpack.c.b16 %v1433, %v1421
    %v1698 = vpack.c.b16 %v1434, %v1422
    %v1699 = vpack.c.b16 %v1435, %v1423
    %v1700 = vpack.c.b16 %v1436, %v1424
    %v1701 = vpack.c.b16 %v1437, %v1425
    %v1702 = vpack.c.b16 %v1438, %v1426
    %v1703 = vpack.c.b16 %v1439, %v1427
    %v1704 = vpack.c.b16 %v1452, %v1440
    %v1705 = vpack.c.b16 %v1453, %v1441
    %v1706 = vpack.c.b16 %v1454, %v1442
    %v1707 = vpack.c.b16 %v1455, %v1443
    %v1708 = vpack.c.b16 %v1456, %v1444
    %v1709 = vpack.c.b16 %v1457, %v1445
    %v1710 = vpack.c.b16 %v1458, %v1446
    %v1711 = vpack.c.b16 %v1459, %v1447
    %v1712 = vpack.c.b16 %v1460, %v1448
    %v1713 = vpack.c.b16 %v1461, %v1449
    %v1714 = vpack.c.b16 %v1462, %v1450
    %v1715 = vpack.c.b16 %v1463, %v1451
    %v1716 = vpack.c.b16 %v1476, %v1464
    %v1717 = vpack.c.b16 %v1477, %v1465
    %v1718 = vpack.c.b16 %v1478, %v1466
    %v1719 = vpack.c.b16 %v1479, %v1467
    %v1720 = vpack.c.b16 %v1480, %v1468
    %v1721 = vpack.c.b16 %v1481, %v1469
    %v1722 = vpack.c.b16 %v1482, %v1470
    %v1723 = vpack.c.b16 %v1483, %v1471
    %v1724 = vpack.c.b16 %v1484, %v1472
    %v1725 = vpack.c.b16 %v1485, %v1473
    %v1726 = vpack.c.b16 %v1486, %v1474
    %v1727 = vpack.c.b16 %v1487, %v1475
    %v1728 = vpack.c.b16 %v1500, %v1488
    %v1729 = vpack.c.b16 %v1501, %v1489
    %v1730 = vpack.c.b16 %v1502, %v1490
    %v1731 = vpack.c.b16 %v1503, %v1491
    %v1732 = vpack.c.b16 %v1504, %v1492
    %v1733 = vpack.c.b16 %v1505, %v1493
    %v1734 = vpack.c.b16 %v1506, %v1494
    %v1735 = vpack.c.b16 %v1507, %v1495
    %v1736 = vpack.c.b16 %v1508, %v1496
    %v1737 = vpack.c.b16 %v1509, %v1497
    %v1738 = vpack.c.b16 %v1510, %v1498
    %v1739 = vpack.c.b16 %v1511, %v1499
    %v1740 = vpack.c.b16 %v1524, %v1512
    %v1741 = vpack.c.b16 %v1525, %v1513
    %v1742 = vpack.c.b16 %v1526, %v1514
    %v1743 = vpack.c.b16 %v1527, %v1515
    %v1744 = vpack.c.b16 %v1528, %v1516
    %v1745 = vpack.c.b16 %v1529, %v1517
    %v1746 = vpack.c.b16 %v1530, %v1518
    %v1747 = vpack.c.b16 %v1531, %v1519
    %v1748 = vpack.c.b16 %v1532, %v1520
    %v1749 = vpack.c.b16 %v1533, %v1521
    %v1750 = vpack.c.b16 %v1534, %v1522
    %v1751 = vpack.c.b16 %v1535, %v1523
    %v1752 = vpack.c.b16 %v1548, %v1536
    %v1753 = vpack.c.b16 %v1549, %v1537
    %v1754 = vpack.c.b16 %v1550, %v1538
    %v1755 = vpack.c.b16 %v1551, %v1539
    %v1756 = vpack.c.b16 %v1552, %v1540
    %v1757 = vpack.c.b16 %v1553, %v1541
    %v1758 = vpack.c.b16 %v1554, %v1542
    %v1759 = vpack.c.b16 %v1555, %v1543
    %v1760 = vpack.c.b16 %v1556, %v1544
    %v1761 = vpack.c.b16 %v1557, %v1545
    %v1762 = vpack.c.b16 %v1558, %v1546
    %v1763 = vpack.c.b16 %v1559, %v1547
    %v1764 = vpack.c.b16 %v1572, %v1560
    %v1765 = vpack.c.b16 %v1573, %v1561
    %v1766 = vpack.c.b16 %v1574, %v1562
    %v1767 = vpack.c.b16 %v1575, %v1563
    %v1768 = vpack.c.b16 %v1576, %v1564
    %v1769 = vpack.c.b16 %v1577, %v1565
    %v1770 = vpack.c.b16 %v1578, %v1566
    %v1771 = vpack.c.b16 %v1579, %v1567
    %v1772 = vpack.c.b16 %v1580, %v1568
    %v1773 = vpack.c.b16 %v1581, %v1569
    %v1774 = vpack.c.b16 %v1582, %v1570
    %v1775 = vpack.c.b16 %v1583, %v1571
    %1968 = vmatpush.bf16.msra.mxu0 %v1668
    %1969 = vmatpush.bf16.msra.mxu0 %v1656
    %1970 = vmatpush.bf16.msra.mxu0 %v1644
    %1971 = vmatpush.bf16.msra.mxu0 %v1632
    %1972 = vmatpush.bf16.msra.mxu0 %v1620
    %1973 = vmatpush.bf16.msra.mxu0 %v1608
    %1974 = vmatpush.bf16.msra.mxu0 %v1596
    %1975 = vmatpush.bf16.msra.mxu0 %v1584
    %1976 = vmatmul.bf16.gmra.mxu0 %v786
    %v1977 = vpop.f32.mrf.mxu0
    %v1978 = vadd.f32 %v984, %v1977
    %v1979 = vpop.f32.mrf.mxu0
    %1980 = vdwg.mxu0
    %1981 = vmatpush.bf16.msra.mxu0 %v1764
    %1982 = vmatpush.bf16.msra.mxu0 %v1752
    %1983 = vmatpush.bf16.msra.mxu0 %v1740
    %1984 = vmatpush.bf16.msra.mxu0 %v1728
    %1985 = vmatpush.bf16.msra.mxu0 %v1716
    %1986 = vmatpush.bf16.msra.mxu0 %v1704
    %1987 = vmatpush.bf16.msra.mxu0 %v1692
    %1988 = vmatpush.bf16.msra.mxu0 %v1680
    %1989 = vmatmul.bf16.gmra.mxu0 %v787
    %v1990 = vpop.f32.mrf.mxu0
    %v1991 = vadd.f32 %v1978, %v1990
    %v1992 = vpop.f32.mrf.mxu0
    %1993 = vdwg.mxu0
    %1994 = vmatpush.bf16.msra.mxu0 %v1669
    %1995 = vmatpush.bf16.msra.mxu0 %v1657
    %1996 = vmatpush.bf16.msra.mxu0 %v1645
    %1997 = vmatpush.bf16.msra.mxu0 %v1633
    %1998 = vmatpush.bf16.msra.mxu0 %v1621
    %1999 = vmatpush.bf16.msra.mxu0 %v1609
    %2000 = vmatpush.bf16.msra.mxu0 %v1597
    %2001 = vmatpush.bf16.msra.mxu0 %v1585
    %2002 = vmatmul.bf16.gmra.mxu0 %v786
    %v2003 = vpop.f32.mrf.mxu0
    %v2004 = vadd.f32 %v985, %v2003
    %v2005 = vpop.f32.mrf.mxu0
    %2006 = vdwg.mxu0
    %2007 = vmatpush.bf16.msra.mxu0 %v1765
    %2008 = vmatpush.bf16.msra.mxu0 %v1753
    %2009 = vmatpush.bf16.msra.mxu0 %v1741
    %2010 = vmatpush.bf16.msra.mxu0 %v1729
    %2011 = vmatpush.bf16.msra.mxu0 %v1717
    %2012 = vmatpush.bf16.msra.mxu0 %v1705
    %2013 = vmatpush.bf16.msra.mxu0 %v1693
    %2014 = vmatpush.bf16.msra.mxu0 %v1681
    %2015 = vmatmul.bf16.gmra.mxu0 %v787
    %v2016 = vpop.f32.mrf.mxu0
    %v2017 = vadd.f32 %v2004, %v2016
    %v2018 = vpop.f32.mrf.mxu0
    %2019 = vdwg.mxu0
    %2020 = vmatpush.bf16.msra.mxu0 %v1670
    %2021 = vmatpush.bf16.msra.mxu0 %v1658
    %2022 = vmatpush.bf16.msra.mxu0 %v1646
    %2023 = vmatpush.bf16.msra.mxu0 %v1634
    %2024 = vmatpush.bf16.msra.mxu0 %v1622
    %2025 = vmatpush.bf16.msra.mxu0 %v1610
    %2026 = vmatpush.bf16.msra.mxu0 %v1598
    %2027 = vmatpush.bf16.msra.mxu0 %v1586
    %2028 = vmatmul.bf16.gmra.mxu0 %v786
    %v2029 = vpop.f32.mrf.mxu0
    %v2030 = vadd.f32 %v986, %v2029
    %v2031 = vpop.f32.mrf.mxu0
    %2032 = vdwg.mxu0
    %2033 = vmatpush.bf16.msra.mxu0 %v1766
    %2034 = vmatpush.bf16.msra.mxu0 %v1754
    %2035 = vmatpush.bf16.msra.mxu0 %v1742
    %2036 = vmatpush.bf16.msra.mxu0 %v1730
    %2037 = vmatpush.bf16.msra.mxu0 %v1718
    %2038 = vmatpush.bf16.msra.mxu0 %v1706
    %2039 = vmatpush.bf16.msra.mxu0 %v1694
    %2040 = vmatpush.bf16.msra.mxu0 %v1682
    %2041 = vmatmul.bf16.gmra.mxu0 %v787
    %v2042 = vpop.f32.mrf.mxu0
    %v2043 = vadd.f32 %v2030, %v2042
    %v2044 = vpop.f32.mrf.mxu0
    %2045 = vdwg.mxu0
    %2046 = vmatpush.bf16.msra.mxu0 %v1671
    %2047 = vmatpush.bf16.msra.mxu0 %v1659
    %2048 = vmatpush.bf16.msra.mxu0 %v1647
    %2049 = vmatpush.bf16.msra.mxu0 %v1635
    %2050 = vmatpush.bf16.msra.mxu0 %v1623
    %2051 = vmatpush.bf16.msra.mxu0 %v1611
    %2052 = vmatpush.bf16.msra.mxu0 %v1599
    %2053 = vmatpush.bf16.msra.mxu0 %v1587
    %2054 = vmatmul.bf16.gmra.mxu0 %v786
    %v2055 = vpop.f32.mrf.mxu0
    %v2056 = vadd.f32 %v987, %v2055
    %v2057 = vpop.f32.mrf.mxu0
    %2058 = vdwg.mxu0
    %2059 = vmatpush.bf16.msra.mxu0 %v1767
    %2060 = vmatpush.bf16.msra.mxu0 %v1755
    %2061 = vmatpush.bf16.msra.mxu0 %v1743
    %2062 = vmatpush.bf16.msra.mxu0 %v1731
    %2063 = vmatpush.bf16.msra.mxu0 %v1719
    %2064 = vmatpush.bf16.msra.mxu0 %v1707
    %2065 = vmatpush.bf16.msra.mxu0 %v1695
    %2066 = vmatpush.bf16.msra.mxu0 %v1683
    %2067 = vmatmul.bf16.gmra.mxu0 %v787
    %v2068 = vpop.f32.mrf.mxu0
    %v2069 = vadd.f32 %v2056, %v2068
    %v2070 = vpop.f32.mrf.mxu0
    %2071 = vdwg.mxu0
    %2072 = vmatpush.bf16.msra.mxu0 %v1672
    %2073 = vmatpush.bf16.msra.mxu0 %v1660
    %2074 = vmatpush.bf16.msra.mxu0 %v1648
    %2075 = vmatpush.bf16.msra.mxu0 %v1636
    %2076 = vmatpush.bf16.msra.mxu0 %v1624
    %2077 = vmatpush.bf16.msra.mxu0 %v1612
    %2078 = vmatpush.bf16.msra.mxu0 %v1600
    %2079 = vmatpush.bf16.msra.mxu0 %v1588
    %2080 = vmatmul.bf16.gmra.mxu0 %v786
    %v2081 = vpop.f32.mrf.mxu0
    %v2082 = vadd.f32 %v988, %v2081
    %v2083 = vpop.f32.mrf.mxu0
    %2084 = vdwg.mxu0
    %2085 = vmatpush.bf16.msra.mxu0 %v1768
    %2086 = vmatpush.bf16.msra.mxu0 %v1756
    %2087 = vmatpush.bf16.msra.mxu0 %v1744
    %2088 = vmatpush.bf16.msra.mxu0 %v1732
    %2089 = vmatpush.bf16.msra.mxu0 %v1720
    %2090 = vmatpush.bf16.msra.mxu0 %v1708
    %2091 = vmatpush.bf16.msra.mxu0 %v1696
    %2092 = vmatpush.bf16.msra.mxu0 %v1684
    %2093 = vmatmul.bf16.gmra.mxu0 %v787
    %v2094 = vpop.f32.mrf.mxu0
    %v2095 = vadd.f32 %v2082, %v2094
    %v2096 = vpop.f32.mrf.mxu0
    %2097 = vdwg.mxu0
    %2098 = vmatpush.bf16.msra.mxu0 %v1673
    %2099 = vmatpush.bf16.msra.mxu0 %v1661
    %2100 = vmatpush.bf16.msra.mxu0 %v1649
    %2101 = vmatpush.bf16.msra.mxu0 %v1637
    %2102 = vmatpush.bf16.msra.mxu0 %v1625
    %2103 = vmatpush.bf16.msra.mxu0 %v1613
    %2104 = vmatpush.bf16.msra.mxu0 %v1601
    %2105 = vmatpush.bf16.msra.mxu0 %v1589
    %2106 = vmatmul.bf16.gmra.mxu0 %v786
    %v2107 = vpop.f32.mrf.mxu0
    %v2108 = vadd.f32 %v989, %v2107
    %v2109 = vpop.f32.mrf.mxu0
    %2110 = vdwg.mxu0
    %2111 = vmatpush.bf16.msra.mxu0 %v1769
    %2112 = vmatpush.bf16.msra.mxu0 %v1757
    %2113 = vmatpush.bf16.msra.mxu0 %v1745
    %2114 = vmatpush.bf16.msra.mxu0 %v1733
    %2115 = vmatpush.bf16.msra.mxu0 %v1721
    %2116 = vmatpush.bf16.msra.mxu0 %v1709
    %2117 = vmatpush.bf16.msra.mxu0 %v1697
    %2118 = vmatpush.bf16.msra.mxu0 %v1685
    %2119 = vmatmul.bf16.gmra.mxu0 %v787
    %v2120 = vpop.f32.mrf.mxu0
    %v2121 = vadd.f32 %v2108, %v2120
    %v2122 = vpop.f32.mrf.mxu0
    %2123 = vdwg.mxu0
    %2124 = vmatpush.bf16.msra.mxu0 %v1674
    %2125 = vmatpush.bf16.msra.mxu0 %v1662
    %2126 = vmatpush.bf16.msra.mxu0 %v1650
    %2127 = vmatpush.bf16.msra.mxu0 %v1638
    %2128 = vmatpush.bf16.msra.mxu0 %v1626
    %2129 = vmatpush.bf16.msra.mxu0 %v1614
    %2130 = vmatpush.bf16.msra.mxu0 %v1602
    %2131 = vmatpush.bf16.msra.mxu0 %v1590
    %2132 = vmatmul.bf16.gmra.mxu0 %v786
    %v2133 = vpop.f32.mrf.mxu0
    %v2134 = vadd.f32 %v990, %v2133
    %v2135 = vpop.f32.mrf.mxu0
    %2136 = vdwg.mxu0
    %2137 = vmatpush.bf16.msra.mxu0 %v1770
    %2138 = vmatpush.bf16.msra.mxu0 %v1758
    %2139 = vmatpush.bf16.msra.mxu0 %v1746
    %2140 = vmatpush.bf16.msra.mxu0 %v1734
    %2141 = vmatpush.bf16.msra.mxu0 %v1722
    %2142 = vmatpush.bf16.msra.mxu0 %v1710
    %2143 = vmatpush.bf16.msra.mxu0 %v1698
    %2144 = vmatpush.bf16.msra.mxu0 %v1686
    %2145 = vmatmul.bf16.gmra.mxu0 %v787
    %v2146 = vpop.f32.mrf.mxu0
    %v2147 = vadd.f32 %v2134, %v2146
    %v2148 = vpop.f32.mrf.mxu0
    %2149 = vdwg.mxu0
    %2150 = vmatpush.bf16.msra.mxu0 %v1675
    %2151 = vmatpush.bf16.msra.mxu0 %v1663
    %2152 = vmatpush.bf16.msra.mxu0 %v1651
    %2153 = vmatpush.bf16.msra.mxu0 %v1639
    %2154 = vmatpush.bf16.msra.mxu0 %v1627
    %2155 = vmatpush.bf16.msra.mxu0 %v1615
    %2156 = vmatpush.bf16.msra.mxu0 %v1603
    %2157 = vmatpush.bf16.msra.mxu0 %v1591
    %2158 = vmatmul.bf16.gmra.mxu0 %v786
    %v2159 = vpop.f32.mrf.mxu0
    %v2160 = vadd.f32 %v991, %v2159
    %v2161 = vpop.f32.mrf.mxu0
    %2162 = vdwg.mxu0
    %2163 = vmatpush.bf16.msra.mxu0 %v1771
    %2164 = vmatpush.bf16.msra.mxu0 %v1759
    %2165 = vmatpush.bf16.msra.mxu0 %v1747
    %2166 = vmatpush.bf16.msra.mxu0 %v1735
    %2167 = vmatpush.bf16.msra.mxu0 %v1723
    %2168 = vmatpush.bf16.msra.mxu0 %v1711
    %2169 = vmatpush.bf16.msra.mxu0 %v1699
    %2170 = vmatpush.bf16.msra.mxu0 %v1687
    %2171 = vmatmul.bf16.gmra.mxu0 %v787
    %v2172 = vpop.f32.mrf.mxu0
    %v2173 = vadd.f32 %v2160, %v2172
    %v2174 = vpop.f32.mrf.mxu0
    %2175 = vdwg.mxu0
    %2176 = vmatpush.bf16.msra.mxu0 %v1676
    %2177 = vmatpush.bf16.msra.mxu0 %v1664
    %2178 = vmatpush.bf16.msra.mxu0 %v1652
    %2179 = vmatpush.bf16.msra.mxu0 %v1640
    %2180 = vmatpush.bf16.msra.mxu0 %v1628
    %2181 = vmatpush.bf16.msra.mxu0 %v1616
    %2182 = vmatpush.bf16.msra.mxu0 %v1604
    %2183 = vmatpush.bf16.msra.mxu0 %v1592
    %2184 = vmatmul.bf16.gmra.mxu0 %v786
    %v2185 = vpop.f32.mrf.mxu0
    %v2186 = vadd.f32 %v992, %v2185
    %v2187 = vpop.f32.mrf.mxu0
    %2188 = vdwg.mxu0
    %2189 = vmatpush.bf16.msra.mxu0 %v1772
    %2190 = vmatpush.bf16.msra.mxu0 %v1760
    %2191 = vmatpush.bf16.msra.mxu0 %v1748
    %2192 = vmatpush.bf16.msra.mxu0 %v1736
    %2193 = vmatpush.bf16.msra.mxu0 %v1724
    %2194 = vmatpush.bf16.msra.mxu0 %v1712
    %2195 = vmatpush.bf16.msra.mxu0 %v1700
    %2196 = vmatpush.bf16.msra.mxu0 %v1688
    %2197 = vmatmul.bf16.gmra.mxu0 %v787
    %v2198 = vpop.f32.mrf.mxu0
    %v2199 = vadd.f32 %v2186, %v2198
    %v2200 = vpop.f32.mrf.mxu0
    %2201 = vdwg.mxu0
    %2202 = vmatpush.bf16.msra.mxu0 %v1677
    %2203 = vmatpush.bf16.msra.mxu0 %v1665
    %2204 = vmatpush.bf16.msra.mxu0 %v1653
    %2205 = vmatpush.bf16.msra.mxu0 %v1641
    %2206 = vmatpush.bf16.msra.mxu0 %v1629
    %2207 = vmatpush.bf16.msra.mxu0 %v1617
    %2208 = vmatpush.bf16.msra.mxu0 %v1605
    %2209 = vmatpush.bf16.msra.mxu0 %v1593
    %2210 = vmatmul.bf16.gmra.mxu0 %v786
    %v2211 = vpop.f32.mrf.mxu0
    %v2212 = vadd.f32 %v993, %v2211
    %v2213 = vpop.f32.mrf.mxu0
    %2214 = vdwg.mxu0
    %2215 = vmatpush.bf16.msra.mxu0 %v1773
    %2216 = vmatpush.bf16.msra.mxu0 %v1761
    %2217 = vmatpush.bf16.msra.mxu0 %v1749
    %2218 = vmatpush.bf16.msra.mxu0 %v1737
    %2219 = vmatpush.bf16.msra.mxu0 %v1725
    %2220 = vmatpush.bf16.msra.mxu0 %v1713
    %2221 = vmatpush.bf16.msra.mxu0 %v1701
    %2222 = vmatpush.bf16.msra.mxu0 %v1689
    %2223 = vmatmul.bf16.gmra.mxu0 %v787
    %v2224 = vpop.f32.mrf.mxu0
    %v2225 = vadd.f32 %v2212, %v2224
    %v2226 = vpop.f32.mrf.mxu0
    %2227 = vdwg.mxu0
    %2228 = vmatpush.bf16.msra.mxu0 %v1678
    %2229 = vmatpush.bf16.msra.mxu0 %v1666
    %2230 = vmatpush.bf16.msra.mxu0 %v1654
    %2231 = vmatpush.bf16.msra.mxu0 %v1642
    %2232 = vmatpush.bf16.msra.mxu0 %v1630
    %2233 = vmatpush.bf16.msra.mxu0 %v1618
    %2234 = vmatpush.bf16.msra.mxu0 %v1606
    %2235 = vmatpush.bf16.msra.mxu0 %v1594
    %2236 = vmatmul.bf16.gmra.mxu0 %v786
    %v2237 = vpop.f32.mrf.mxu0
    %v2238 = vadd.f32 %v994, %v2237
    %v2239 = vpop.f32.mrf.mxu0
    %2240 = vdwg.mxu0
    %2241 = vmatpush.bf16.msra.mxu0 %v1774
    %2242 = vmatpush.bf16.msra.mxu0 %v1762
    %2243 = vmatpush.bf16.msra.mxu0 %v1750
    %2244 = vmatpush.bf16.msra.mxu0 %v1738
    %2245 = vmatpush.bf16.msra.mxu0 %v1726
    %2246 = vmatpush.bf16.msra.mxu0 %v1714
    %2247 = vmatpush.bf16.msra.mxu0 %v1702
    %2248 = vmatpush.bf16.msra.mxu0 %v1690
    %2249 = vmatmul.bf16.gmra.mxu0 %v787
    %v2250 = vpop.f32.mrf.mxu0
    %v2251 = vadd.f32 %v2238, %v2250
    %v2252 = vpop.f32.mrf.mxu0
    %2253 = vdwg.mxu0
    %2254 = vmatpush.bf16.msra.mxu0 %v1679
    %2255 = vmatpush.bf16.msra.mxu0 %v1667
    %2256 = vmatpush.bf16.msra.mxu0 %v1655
    %2257 = vmatpush.bf16.msra.mxu0 %v1643
    %2258 = vmatpush.bf16.msra.mxu0 %v1631
    %2259 = vmatpush.bf16.msra.mxu0 %v1619
    %2260 = vmatpush.bf16.msra.mxu0 %v1607
    %2261 = vmatpush.bf16.msra.mxu0 %v1595
    %2262 = vmatmul.bf16.gmra.mxu0 %v786
    %v2263 = vpop.f32.mrf.mxu0
    %v2264 = vadd.f32 %v995, %v2263
    %v2265 = vpop.f32.mrf.mxu0
    %2266 = vdwg.mxu0
    %2267 = vmatpush.bf16.msra.mxu0 %v1775
    %2268 = vmatpush.bf16.msra.mxu0 %v1763
    %2269 = vmatpush.bf16.msra.mxu0 %v1751
    %2270 = vmatpush.bf16.msra.mxu0 %v1739
    %2271 = vmatpush.bf16.msra.mxu0 %v1727
    %2272 = vmatpush.bf16.msra.mxu0 %v1715
    %2273 = vmatpush.bf16.msra.mxu0 %v1703
    %2274 = vmatpush.bf16.msra.mxu0 %v1691
    %2275 = vmatmul.bf16.gmra.mxu0 %v787
    %v2276 = vpop.f32.mrf.mxu0
    %v2277 = vadd.f32 %v2264, %v2276
    %v2278 = vpop.f32.mrf.mxu0
    %2279 = vdwg.mxu0
    %2280 = vst [vmem:[#allocation2] sm:$0xff] %v1991
    %2281 = vst [vmem:[#allocation2 + $0x8] sm:$0xff] %v2017
    %2282 = vst [vmem:[#allocation2 + $0x10] sm:$0xff] %v2043
    %2283 = vst [vmem:[#allocation2 + $0x18] sm:$0xff] %v2069
    %2284 = vst [vmem:[#allocation2 + $0x20] sm:$0xff] %v2095
    %2285 = vst [vmem:[#allocation2 + $0x28] sm:$0xff] %v2121
    %2286 = vst [vmem:[#allocation2 + $0x30] sm:$0xff] %v2147
    %2287 = vst [vmem:[#allocation2 + $0x38] sm:$0xff] %v2173
    %2288 = vst [vmem:[#allocation2 + $0x40] sm:$0xff] %v2199
    %2289 = vst [vmem:[#allocation2 + $0x48] sm:$0xff] %v2225
    %2290 = vst [vmem:[#allocation2 + $0x50] sm:$0xff] %v2251
    %2291 = vst [vmem:[#allocation2 + $0x58] sm:$0xff] %v2277
    // Predicated region
    $region30: #{mlp_forward.1} parent=1 // pred_check
      _
    $region31: #{mlp_forward.1} parent=1 // pred_check_branch
      %2293 = sbr.rel (0) target = $region33
    $region32: #{mlp_forward.1} parent=1 // pred_region
      %2295 = vsyncadd [#allocation3], 0
      %s2297 = sshll.u32 [#allocation2], 4
      %s2298 = int_to_ptr.vmem [resolvable:$true] %s2297
      %s2299 = sshll.u32 %s7, 4
      %s2300 = int_to_ptr.hbm [resolvable:$true] %s2299
      %2302 = dma.vmem_to_hbm [thread:$0]  %s2298, 1536, %s2300, [#allocation3]
    $region33: #{mlp_forward.1} parent=1 // pred_fallthru
      _
    // Predicated region
    $region34: #{mlp_forward.1} parent=1 // pred_check
      _
    $region35: #{mlp_forward.1} parent=1 // pred_check_branch
      %2304 = sbr.rel (0) target = $region37
    $region36: #{mlp_forward.1} parent=1 // pred_region
      %2306 = dma.done [#allocation3], 1536
    $region37: #{mlp_forward.1} parent=1 // pred_fallthru
      _
    %2307 = vsyncpa [#allocation3], 1

</llo_original>
